<compile_context>
chip_gen: v7x
topology: tpu7x:2x2x1
jax: 0.10.0
libtpu: 0.0.40
codegen_flags: <defaults>
</compile_context>

<pallas_src>
import functools

import jax
import jax.numpy as jnp
from jax import lax
from jax.experimental import pallas as pl
from jax.experimental.pallas import tpu as pltpu


def _lstm_chunk_kernel(rem, unroll, x_ref, wih_ref, whh_ref, bias_ref,
                       out_ref, h_ref, c_ref, gates_ref):
    """One time-chunk of the LSTM recurrence.

    x_ref     : [B, Tc, H]   raw input chunk (batch-first, matmul dtype, e.g. bf16)
    wih_ref   : [H, 4H]      W_ih^T, resident across the grid
    whh_ref   : [H, 4H]      W_hh^T, resident across the grid
    bias_ref  : [1, 4H]      b_ih + b_hh (f32), resident
    out_ref   : [B, Tc, H]   hidden states for this chunk (batch-first, f32)
    h_ref     : [B, H]       resident output == recurrent h state (f32)
    c_ref     : [B, H]       resident output == recurrent c state (f32)
    gates_ref : [B, Tc, 4H]  VMEM scratch: per-chunk input projection (f32)
    """
    chunk = pl.program_id(0)
    n_chunks = pl.num_programs(0)
    batch, tc, hidden = out_ref.shape

    @pl.when(chunk == 0)
    def _():
        h_ref[...] = jnp.zeros_like(h_ref)
        c_ref[...] = jnp.zeros_like(c_ref)

    # ---- per-chunk preamble (off the serial critical path) -------------------
    # Fused input projection on the MXU: gates_in = x_chunk @ W_ih^T + (b_ih+b_hh).
    w_ih = wih_ref[...]                          # [H, 4H] (bf16)
    bias = bias_ref[...]                         # [1, 4H] (f32)
    for b in range(batch):                       # batch is small & static
        gates_ref[b] = jnp.dot(x_ref[b], w_ih,
                               preferred_element_type=jnp.float32) + bias

    # Hoist the recurrent weights out of the step loop.
    # TODO(synk): hold W_hh in MXU staging regs across the unrolled loop via
    # pltpu.matmul_push_rhs / matmul_acc_lhs / matmul_pop.
    w_hh = whh_ref[...]                          # [H, 4H] (bf16)

    def step(s, carry):
        del carry
        h_prev = h_ref[...]                      # [B, H] f32
        c_prev = c_ref[...]

        g_in = gates_ref[:, pl.ds(s, 1), :]      # [B, 1, 4H] f32
        g_in = g_in.reshape(batch, 4 * hidden)   # [B, 4H]

        # Only the hidden projection remains on the serial critical path.
        gates = g_in + jnp.dot(h_prev.astype(w_hh.dtype), w_hh,
                               preferred_element_type=jnp.float32)   # [B, 4H] f32

        if hidden >= 128:
            # Only the needed slices through the single EUP unit at large H.
            i_g = jax.nn.sigmoid(gates[:, 0 * hidden:1 * hidden])
            f_g = jax.nn.sigmoid(gates[:, 1 * hidden:2 * hidden])
            g_g = jnp.tanh(gates[:, 2 * hidden:3 * hidden])
            o_g = jax.nn.sigmoid(gates[:, 3 * hidden:4 * hidden])
        else:
            # Small H: full-width passes use fewer vreg passes than 4 sliced ones.
            sig = jax.nn.sigmoid(gates)
            tnh = jnp.tanh(gates)
            i_g = sig[:, 0 * hidden:1 * hidden]
            f_g = sig[:, 1 * hidden:2 * hidden]
            g_g = tnh[:, 2 * hidden:3 * hidden]
            o_g = sig[:, 3 * hidden:4 * hidden]

        c_new = f_g * c_prev + i_g * g_g
        h_new = o_g * jnp.tanh(c_new)

        h_ref[...] = h_new
        c_ref[...] = c_new
        # TODO(synk): pack 128/H consecutive timesteps into one lane-dense [B, 128]
        # store when H < 128 (currently a masked partial store per step).
        out_ref[:, pl.ds(s, 1), :] = (
            h_new.reshape(batch, 1, hidden).astype(out_ref.dtype))
        return 0

    def run_steps(n):
        lax.fori_loop(0, n, step, 0, unroll=min(n, unroll))

    if rem == 0:
        # Fast path: no ragged-chunk masking anywhere on the serial chain.
        run_steps(tc)
    else:
        @pl.when(chunk != n_chunks - 1)
        def _():
            run_steps(tc)

        @pl.when(chunk == n_chunks - 1)
        def _():
            run_steps(rem)


def context_memory_forward(x, w_ih, w_hh, b_ih, b_hh, *,
                           time_chunk=128, unroll=8,
                           matmul_dtype=jnp.bfloat16):
    """ContextMemory forward. x: [B, T, H]; w_ih, w_hh: [4H, H]; b_ih, b_hh: [4H]."""
    B, T, H = x.shape

    # MXU operands in bf16 (f32 accumulation); elementwise gate math stays f32
    # (required on v5e, keeps accuracy everywhere).
    x_mm = x.astype(matmul_dtype)
    wih_t = jnp.asarray(w_ih).astype(matmul_dtype).T           # [H, 4H]
    whh_t = jnp.asarray(w_hh).astype(matmul_dtype).T           # [H, 4H]
    bias = (jnp.asarray(b_ih, jnp.float32)
            + jnp.asarray(b_hh, jnp.float32)).reshape(1, 4 * H)

    # Time chunk is the second-to-last dim of the batch-first blocks, so it must be
    # a multiple of 8 (sublane tile) unless it equals the full sequence length.
    # TODO(synk): re-derive time_chunk per generation (v7x has 64 MiB VMEM) and shard
    # the batch across v7x's two TensorCores via a leading "parallel" grid axis.
    if T <= time_chunk:
        tc = T
    else:
        tc = max(8, (time_chunk // 8) * 8)
    n_chunks = pl.cdiv(T, tc)
    rem = T % tc          # ragged last chunk handled by a trace-time branch

    # Explicit VMEM budget: double-buffered x/out blocks + gates scratch + resident
    # weights/bias/state. Raises v5e's 16 MiB default scoped limit; capped for v7x.
    mm_bytes = jnp.dtype(matmul_dtype).itemsize
    vmem_need = (2 * B * tc * H * mm_bytes          # x chunk (double-buffered)
                 + 2 * B * tc * H * 4               # out chunk (double-buffered)
                 + B * tc * 4 * H * 4               # gates scratch
                 + 2 * H * 4 * H * mm_bytes         # resident W_ih^T + W_hh^T
                 + 4 * H * 4 + 2 * B * H * 4)       # bias + h/c state
    vmem_limit = int(min(max(2 * vmem_need, 32 * 1024 * 1024), 64 * 1024 * 1024))

    kernel = functools.partial(_lstm_chunk_kernel, rem, unroll)

    out, h_n, c_n = pl.pallas_call(
        kernel,
        out_shape=(
            jax.ShapeDtypeStruct((B, T, H), jnp.float32),     # batch-first output
            jax.ShapeDtypeStruct((B, H), jnp.float32),        # h_n
            jax.ShapeDtypeStruct((B, H), jnp.float32),        # c_n
        ),
        grid_spec=pltpu.PrefetchScalarGridSpec(
            num_scalar_prefetch=0,
            grid=(n_chunks,),
            in_specs=[
                pl.BlockSpec((B, tc, H), lambda i: (0, i, 0)),     # x chunk
                pl.BlockSpec((H, 4 * H), lambda i: (0, 0)),        # W_ih^T (resident)
                pl.BlockSpec((H, 4 * H), lambda i: (0, 0)),        # W_hh^T (resident)
                pl.BlockSpec((1, 4 * H), lambda i: (0, 0)),        # bias (resident)
            ],
            out_specs=(
                pl.BlockSpec((B, tc, H), lambda i: (0, i, 0)),     # output chunk
                pl.BlockSpec((B, H), lambda i: (0, 0)),            # h_n (resident state)
                pl.BlockSpec((B, H), lambda i: (0, 0)),            # c_n (resident state)
            ),
            scratch_shapes=[pltpu.VMEM((B, tc, 4 * H), jnp.float32)],
        ),
        compiler_params=pltpu.CompilerParams(
            dimension_semantics=("arbitrary",),    # serial recurrence over time chunks
            vmem_limit_bytes=vmem_limit,
        ),
    )(x_mm, wih_t, whh_t, bias)

    next_state = (h_n[None], c_n[None])            # num_layers = 1 leading dim
    # torch's output.squeeze(0): only squeezes when B == 1.
    out = out[0] if out.shape[0] == 1 else out
    return out, next_state


def context_memory_ref(x, w_ih, w_hh, b_ih, b_hh):
    """Pure-JAX f32 reference matching nn.LSTM semantics (zero initial state)."""
    B, T, H = x.shape

    def step(carry, x_t):
        h, c = carry
        gates = x_t @ w_ih.T + b_ih + h @ w_hh.T + b_hh
        i, f, g, o = jnp.split(gates, 4, axis=-1)
        i, f, o = jax.nn.sigmoid(i), jax.nn.sigmoid(f), jax.nn.sigmoid(o)
        g = jnp.tanh(g)
        c = f * c + i * g
        h = o * jnp.tanh(c)
        return (h, c), h

    init = (jnp.zeros((B, H), jnp.float32), jnp.zeros((B, H), jnp.float32))
    (h_n, c_n), ys = lax.scan(step, init, jnp.transpose(x, (1, 0, 2)))
    output = jnp.transpose(ys, (1, 0, 2))
    output = output[0] if output.shape[0] == 1 else output
    return output, (h_n[None], c_n[None])


if __name__ == "__main__":
    B, T, H = 2, 8, 32   # embd_dim = 32, n_layers = 1
    key = jax.random.PRNGKey(0)
    kx, k1, k2, k3, k4 = jax.random.split(key, 5)

    # PyTorch LSTM init: U(-1/sqrt(H), 1/sqrt(H))
    bound = 1.0 / jnp.sqrt(jnp.float32(H))
    x = jax.random.normal(kx, (B, T, H), dtype=jnp.float32)
    w_ih = jax.random.uniform(k1, (4 * H, H), jnp.float32, -bound, bound)
    w_hh = jax.random.uniform(k2, (4 * H, H), jnp.float32, -bound, bound)
    b_ih = jax.random.uniform(k3, (4 * H,), jnp.float32, -bound, bound)
    b_hh = jax.random.uniform(k4, (4 * H,), jnp.float32, -bound, bound)

    out, (h_n, c_n) = context_memory_forward(x, w_ih, w_hh, b_ih, b_hh)
    jax.block_until_ready((out, h_n, c_n))

    out_exp, (h_exp, c_exp) = context_memory_ref(x, w_ih, w_hh, b_ih, b_hh)

    assert out.shape == (B, T, H)
    assert h_n.shape == (1, B, H) and c_n.shape == (1, B, H)
    # bf16 MXU operands (f32 accumulation) => tolerance vs. the pure-f32 reference is
    # loosened, as flagged in the performance review; elementwise math stays f32.
    assert jnp.allclose(out, out_exp, atol=5e-2, rtol=5e-2), \
        float(jnp.max(jnp.abs(out - out_exp)))
    assert jnp.allclose(h_n, h_exp, atol=5e-2, rtol=5e-2)
    assert jnp.allclose(c_n, c_exp, atol=5e-2, rtol=5e-2)

    print("KERNEL_OK")
</pallas_src>

<mosaic_0001>
module attributes {stable_mosaic.version = 11 : i64} {
  func.func @_lstm_chunk_kernel(%arg0: i32, %arg1: memref<2x8x32xbf16, #tpu.memory_space<vmem>>, %arg2: memref<32x128xbf16, #tpu.memory_space<vmem>>, %arg3: memref<32x128xbf16, #tpu.memory_space<vmem>>, %arg4: memref<1x128xf32, #tpu.memory_space<vmem>>, %arg5: memref<2x8x32xf32, #tpu.memory_space<vmem>>, %arg6: memref<2x32xf32, #tpu.memory_space<vmem>>, %arg7: memref<2x32xf32, #tpu.memory_space<vmem>>, %arg8: memref<2x8x128xf32, #tpu.memory_space<vmem>>) attributes {dimension_semantics = [#tpu.dimension_semantics<arbitrary>], iteration_bounds = array<i64: 1>, scalar_prefetch = 0 : i64, scratch_operands = 1 : i64, tpu.core_type = #tpu.core_type<tc>, window_params = [{transform_indices = @transform_0, window_bounds = array<i64: 2, 8, 32>}, {pipeline_mode = #tpu.pipeline_mode<synchronous>, transform_indices = @transform_1, window_bounds = array<i64: 32, 128>}, {pipeline_mode = #tpu.pipeline_mode<synchronous>, transform_indices = @transform_2, window_bounds = array<i64: 32, 128>}, {pipeline_mode = #tpu.pipeline_mode<synchronous>, transform_indices = @transform_3, window_bounds = array<i64: 1, 128>}, {transform_indices = @transform_4, window_bounds = array<i64: 2, 8, 32>}, {pipeline_mode = #tpu.pipeline_mode<synchronous>, transform_indices = @transform_5, window_bounds = array<i64: 2, 32>}, {pipeline_mode = #tpu.pipeline_mode<synchronous>, transform_indices = @transform_6, window_bounds = array<i64: 2, 32>}]} {
    %c0_i32 = arith.constant 0 : i32
    %0 = arith.cmpi eq, %arg0, %c0_i32 : i32
    %1 = arith.extui %0 : i1 to i32
    %c0_i32_0 = arith.constant 0 : i32
    %2 = arith.cmpi ne, %1, %c0_i32_0 : i32
    scf.if %2 {
      %cst_131 = arith.constant 0.000000e+00 : f32
      %246 = vector.broadcast %cst_131 : f32 to vector<2x32xf32>
      %c0_132 = arith.constant 0 : index
      %c0_133 = arith.constant 0 : index
      %247 = vector.load %arg6[%c0_132, %c0_133] : memref<2x32xf32, #tpu.memory_space<vmem>>, vector<2x32xf32>
      tpu.vector_store %arg6[%c0_132, %c0_133], %246 {strides = array<i32>} : memref<2x32xf32, #tpu.memory_space<vmem>>, vector<2x32xf32>,
      %cst_134 = arith.constant 0.000000e+00 : f32
      %248 = vector.broadcast %cst_134 : f32 to vector<2x32xf32>
      %c0_135 = arith.constant 0 : index
      %c0_136 = arith.constant 0 : index
      %249 = vector.load %arg7[%c0_135, %c0_136] : memref<2x32xf32, #tpu.memory_space<vmem>>, vector<2x32xf32>
      tpu.vector_store %arg7[%c0_135, %c0_136], %248 {strides = array<i32>} : memref<2x32xf32, #tpu.memory_space<vmem>>, vector<2x32xf32>,
    } else {
    }
    %c0 = arith.constant 0 : index
    %c0_1 = arith.constant 0 : index
    %3 = vector.load %arg2[%c0, %c0_1] : memref<32x128xbf16, #tpu.memory_space<vmem>>, vector<32x128xbf16>
    %c0_2 = arith.constant 0 : index
    %c0_3 = arith.constant 0 : index
    %4 = vector.load %arg4[%c0_2, %c0_3] : memref<1x128xf32, #tpu.memory_space<vmem>>, vector<1x128xf32>
    %c0_4 = arith.constant 0 : index
    %c0_5 = arith.constant 0 : index
    %c0_6 = arith.constant 0 : index
    %5 = vector.load %arg1[%c0_4, %c0_5, %c0_6] : memref<2x8x32xbf16, #tpu.memory_space<vmem>>, vector<1x8x32xbf16>
    %6 = vector.shape_cast %5 : vector<1x8x32xbf16> to vector<8x32xbf16>
    %cst = arith.constant dense<0.000000e+00> : vector<8x128xf32>
    %7 = tpu.matmul %6, %3, %cst {dimension_numbers = #tpu.dot_dimension_numbers<[1], [0], [0], [1], [0, 0, 1, 1], [], []>} : vector<8x32xbf16>, vector<32x128xbf16>, vector<8x128xf32> -> vector<8x128xf32>
    %8 = vector.broadcast %4 : vector<1x128xf32> to vector<8x128xf32>
    %9 = arith.addf %7, %8 : vector<8x128xf32>
    %c0_7 = arith.constant 0 : index
    %c0_8 = arith.constant 0 : index
    %c0_9 = arith.constant 0 : index
    %10 = vector.load %arg8[%c0_7, %c0_8, %c0_9] : memref<2x8x128xf32, #tpu.memory_space<vmem>>, vector<1x8x128xf32>
    %11 = vector.shape_cast %10 : vector<1x8x128xf32> to vector<8x128xf32>
    %12 = vector.shape_cast %9 : vector<8x128xf32> to vector<1x8x128xf32>
    tpu.vector_store %arg8[%c0_7, %c0_8, %c0_9], %12 {strides = array<i32>} : memref<2x8x128xf32, #tpu.memory_space<vmem>>, vector<1x8x128xf32>,
    %c1 = arith.constant 1 : index
    %c0_10 = arith.constant 0 : index
    %c0_11 = arith.constant 0 : index
    %13 = vector.load %arg1[%c1, %c0_10, %c0_11] : memref<2x8x32xbf16, #tpu.memory_space<vmem>>, vector<1x8x32xbf16>
    %14 = vector.shape_cast %13 : vector<1x8x32xbf16> to vector<8x32xbf16>
    %cst_12 = arith.constant dense<0.000000e+00> : vector<8x128xf32>
    %15 = tpu.matmul %14, %3, %cst_12 {dimension_numbers = #tpu.dot_dimension_numbers<[1], [0], [0], [1], [0, 0, 1, 1], [], []>} : vector<8x32xbf16>, vector<32x128xbf16>, vector<8x128xf32> -> vector<8x128xf32>
    %16 = vector.broadcast %4 : vector<1x128xf32> to vector<8x128xf32>
    %17 = arith.addf %15, %16 : vector<8x128xf32>
    %c1_13 = arith.constant 1 : index
    %c0_14 = arith.constant 0 : index
    %c0_15 = arith.constant 0 : index
    %18 = vector.load %arg8[%c1_13, %c0_14, %c0_15] : memref<2x8x128xf32, #tpu.memory_space<vmem>>, vector<1x8x128xf32>
    %19 = vector.shape_cast %18 : vector<1x8x128xf32> to vector<8x128xf32>
    %20 = vector.shape_cast %17 : vector<8x128xf32> to vector<1x8x128xf32>
    tpu.vector_store %arg8[%c1_13, %c0_14, %c0_15], %20 {strides = array<i32>} : memref<2x8x128xf32, #tpu.memory_space<vmem>>, vector<1x8x128xf32>,
    %c0_16 = arith.constant 0 : index
    %c0_17 = arith.constant 0 : index
    %21 = vector.load %arg3[%c0_16, %c0_17] : memref<32x128xbf16, #tpu.memory_space<vmem>>, vector<32x128xbf16>
    %c0_i32_18 = arith.constant 0 : i32
    %c0_19 = arith.constant 0 : index
    %c0_20 = arith.constant 0 : index
    %22 = vector.load %arg6[%c0_19, %c0_20] : memref<2x32xf32, #tpu.memory_space<vmem>>, vector<2x32xf32>
    %c0_21 = arith.constant 0 : index
    %c0_22 = arith.constant 0 : index
    %23 = vector.load %arg7[%c0_21, %c0_22] : memref<2x32xf32, #tpu.memory_space<vmem>>, vector<2x32xf32>
    %c0_23 = arith.constant 0 : index
    %24 = arith.index_cast %c0_i32_18 : i32 to index
    %c0_24 = arith.constant 0 : index
    %25 = vector.load %arg8[%c0_23, %24, %c0_24] : memref<2x8x128xf32, #tpu.memory_space<vmem>>, vector<2x1x128xf32>
    %26 = vector.shape_cast %25 : vector<2x1x128xf32> to vector<2x128xf32>
    %27 = arith.truncf %22 : vector<2x32xf32> to vector<2x32xbf16>
    %cst_25 = arith.constant dense<0.000000e+00> : vector<2x128xf32>
    %28 = tpu.matmul %27, %21, %cst_25 {dimension_numbers = #tpu.dot_dimension_numbers<[1], [0], [0], [1], [0, 0, 1, 1], [], []>} : vector<2x32xbf16>, vector<32x128xbf16>, vector<2x128xf32> -> vector<2x128xf32>
    %29 = arith.addf %26, %28 : vector<2x128xf32>
    %30 = arith.negf %29 : vector<2x128xf32>
    %31 = math.exp %30 : vector<2x128xf32>
    %cst_26 = arith.constant 1.000000e+00 : f32
    %32 = vector.broadcast %cst_26 : f32 to vector<2x128xf32>
    %33 = arith.addf %32, %31 : vector<2x128xf32>
    %34 = arith.divf %32, %33 : vector<2x128xf32>
    %35 = math.tanh %29 : vector<2x128xf32>
    %36 = vector.extract_strided_slice %34 {offsets = [0, 0], sizes = [2, 32], strides = [1, 1]} : vector<2x128xf32> to vector<2x32xf32>
    %37 = vector.extract_strided_slice %34 {offsets = [0, 32], sizes = [2, 32], strides = [1, 1]} : vector<2x128xf32> to vector<2x32xf32>
    %38 = vector.extract_strided_slice %35 {offsets = [0, 64], sizes = [2, 32], strides = [1, 1]} : vector<2x128xf32> to vector<2x32xf32>
    %39 = vector.extract_strided_slice %34 {offsets = [0, 96], sizes = [2, 32], strides = [1, 1]} : vector<2x128xf32> to vector<2x32xf32>
    %40 = arith.mulf %37, %23 : vector<2x32xf32>
    %41 = arith.mulf %36, %38 : vector<2x32xf32>
    %42 = arith.addf %40, %41 : vector<2x32xf32>
    %43 = math.tanh %42 : vector<2x32xf32>
    %44 = arith.mulf %39, %43 : vector<2x32xf32>
    %c0_27 = arith.constant 0 : index
    %c0_28 = arith.constant 0 : index
    %45 = vector.load %arg6[%c0_27, %c0_28] : memref<2x32xf32, #tpu.memory_space<vmem>>, vector<2x32xf32>
    tpu.vector_store %arg6[%c0_27, %c0_28], %44 {strides = array<i32>} : memref<2x32xf32, #tpu.memory_space<vmem>>, vector<2x32xf32>,
    %c0_29 = arith.constant 0 : index
    %c0_30 = arith.constant 0 : index
    %46 = vector.load %arg7[%c0_29, %c0_30] : memref<2x32xf32, #tpu.memory_space<vmem>>, vector<2x32xf32>
    tpu.vector_store %arg7[%c0_29, %c0_30], %42 {strides = array<i32>} : memref<2x32xf32, #tpu.memory_space<vmem>>, vector<2x32xf32>,
    %47 = vector.shape_cast %44 : vector<2x32xf32> to vector<2x1x32xf32>
    %c0_31 = arith.constant 0 : index
    %48 = arith.index_cast %c0_i32_18 : i32 to index
    %c0_32 = arith.constant 0 : index
    %49 = vector.load %arg5[%c0_31, %48, %c0_32] : memref<2x8x32xf32, #tpu.memory_space<vmem>>, vector<2x1x32xf32>
    tpu.vector_store %arg5[%c0_31, %48, %c0_32], %47 {strides = array<i32>} : memref<2x8x32xf32, #tpu.memory_space<vmem>>, vector<2x1x32xf32>,
    %c1_i32 = arith.constant 1 : i32
    %c0_33 = arith.constant 0 : index
    %c0_34 = arith.constant 0 : index
    %50 = vector.load %arg6[%c0_33, %c0_34] : memref<2x32xf32, #tpu.memory_space<vmem>>, vector<2x32xf32>
    %c0_35 = arith.constant 0 : index
    %c0_36 = arith.constant 0 : index
    %51 = vector.load %arg7[%c0_35, %c0_36] : memref<2x32xf32, #tpu.memory_space<vmem>>, vector<2x32xf32>
    %c0_37 = arith.constant 0 : index
    %52 = arith.index_cast %c1_i32 : i32 to index
    %c0_38 = arith.constant 0 : index
    %53 = vector.load %arg8[%c0_37, %52, %c0_38] : memref<2x8x128xf32, #tpu.memory_space<vmem>>, vector<2x1x128xf32>
    %54 = vector.shape_cast %53 : vector<2x1x128xf32> to vector<2x128xf32>
    %55 = arith.truncf %50 : vector<2x32xf32> to vector<2x32xbf16>
    %cst_39 = arith.constant dense<0.000000e+00> : vector<2x128xf32>
    %56 = tpu.matmul %55, %21, %cst_39 {dimension_numbers = #tpu.dot_dimension_numbers<[1], [0], [0], [1], [0, 0, 1, 1], [], []>} : vector<2x32xbf16>, vector<32x128xbf16>, vector<2x128xf32> -> vector<2x128xf32>
    %57 = arith.addf %54, %56 : vector<2x128xf32>
    %58 = arith.negf %57 : vector<2x128xf32>
    %59 = math.exp %58 : vector<2x128xf32>
    %cst_40 = arith.constant 1.000000e+00 : f32
    %60 = vector.broadcast %cst_40 : f32 to vector<2x128xf32>
    %61 = arith.addf %60, %59 : vector<2x128xf32>
    %62 = arith.divf %60, %61 : vector<2x128xf32>
    %63 = math.tanh %57 : vector<2x128xf32>
    %64 = vector.extract_strided_slice %62 {offsets = [0, 0], sizes = [2, 32], strides = [1, 1]} : vector<2x128xf32> to vector<2x32xf32>
    %65 = vector.extract_strided_slice %62 {offsets = [0, 32], sizes = [2, 32], strides = [1, 1]} : vector<2x128xf32> to vector<2x32xf32>
    %66 = vector.extract_strided_slice %63 {offsets = [0, 64], sizes = [2, 32], strides = [1, 1]} : vector<2x128xf32> to vector<2x32xf32>
    %67 = vector.extract_strided_slice %62 {offsets = [0, 96], sizes = [2, 32], strides = [1, 1]} : vector<2x128xf32> to vector<2x32xf32>
    %68 = arith.mulf %65, %51 : vector<2x32xf32>
    %69 = arith.mulf %64, %66 : vector<2x32xf32>
    %70 = arith.addf %68, %69 : vector<2x32xf32>
    %71 = math.tanh %70 : vector<2x32xf32>
    %72 = arith.mulf %67, %71 : vector<2x32xf32>
    %c0_41 = arith.constant 0 : index
    %c0_42 = arith.constant 0 : index
    %73 = vector.load %arg6[%c0_41, %c0_42] : memref<2x32xf32, #tpu.memory_space<vmem>>, vector<2x32xf32>
    tpu.vector_store %arg6[%c0_41, %c0_42], %72 {strides = array<i32>} : memref<2x32xf32, #tpu.memory_space<vmem>>, vector<2x32xf32>,
    %c0_43 = arith.constant 0 : index
    %c0_44 = arith.constant 0 : index
    %74 = vector.load %arg7[%c0_43, %c0_44] : memref<2x32xf32, #tpu.memory_space<vmem>>, vector<2x32xf32>
    tpu.vector_store %arg7[%c0_43, %c0_44], %70 {strides = array<i32>} : memref<2x32xf32, #tpu.memory_space<vmem>>, vector<2x32xf32>,
    %75 = vector.shape_cast %72 : vector<2x32xf32> to vector<2x1x32xf32>
    %c0_45 = arith.constant 0 : index
    %76 = arith.index_cast %c1_i32 : i32 to index
    %c0_46 = arith.constant 0 : index
    %77 = vector.load %arg5[%c0_45, %76, %c0_46] : memref<2x8x32xf32, #tpu.memory_space<vmem>>, vector<2x1x32xf32>
    tpu.vector_store %arg5[%c0_45, %76, %c0_46], %75 {strides = array<i32>} : memref<2x8x32xf32, #tpu.memory_space<vmem>>, vector<2x1x32xf32>,
    %c2_i32 = arith.constant 2 : i32
    %c0_47 = arith.constant 0 : index
    %c0_48 = arith.constant 0 : index
    %78 = vector.load %arg6[%c0_47, %c0_48] : memref<2x32xf32, #tpu.memory_space<vmem>>, vector<2x32xf32>
    %c0_49 = arith.constant 0 : index
    %c0_50 = arith.constant 0 : index
    %79 = vector.load %arg7[%c0_49, %c0_50] : memref<2x32xf32, #tpu.memory_space<vmem>>, vector<2x32xf32>
    %c0_51 = arith.constant 0 : index
    %80 = arith.index_cast %c2_i32 : i32 to index
    %c0_52 = arith.constant 0 : index
    %81 = vector.load %arg8[%c0_51, %80, %c0_52] : memref<2x8x128xf32, #tpu.memory_space<vmem>>, vector<2x1x128xf32>
    %82 = vector.shape_cast %81 : vector<2x1x128xf32> to vector<2x128xf32>
    %83 = arith.truncf %78 : vector<2x32xf32> to vector<2x32xbf16>
    %cst_53 = arith.constant dense<0.000000e+00> : vector<2x128xf32>
    %84 = tpu.matmul %83, %21, %cst_53 {dimension_numbers = #tpu.dot_dimension_numbers<[1], [0], [0], [1], [0, 0, 1, 1], [], []>} : vector<2x32xbf16>, vector<32x128xbf16>, vector<2x128xf32> -> vector<2x128xf32>
    %85 = arith.addf %82, %84 : vector<2x128xf32>
    %86 = arith.negf %85 : vector<2x128xf32>
    %87 = math.exp %86 : vector<2x128xf32>
    %cst_54 = arith.constant 1.000000e+00 : f32
    %88 = vector.broadcast %cst_54 : f32 to vector<2x128xf32>
    %89 = arith.addf %88, %87 : vector<2x128xf32>
    %90 = arith.divf %88, %89 : vector<2x128xf32>
    %91 = math.tanh %85 : vector<2x128xf32>
    %92 = vector.extract_strided_slice %90 {offsets = [0, 0], sizes = [2, 32], strides = [1, 1]} : vector<2x128xf32> to vector<2x32xf32>
    %93 = vector.extract_strided_slice %90 {offsets = [0, 32], sizes = [2, 32], strides = [1, 1]} : vector<2x128xf32> to vector<2x32xf32>
    %94 = vector.extract_strided_slice %91 {offsets = [0, 64], sizes = [2, 32], strides = [1, 1]} : vector<2x128xf32> to vector<2x32xf32>
    %95 = vector.extract_strided_slice %90 {offsets = [0, 96], sizes = [2, 32], strides = [1, 1]} : vector<2x128xf32> to vector<2x32xf32>
    %96 = arith.mulf %93, %79 : vector<2x32xf32>
    %97 = arith.mulf %92, %94 : vector<2x32xf32>
    %98 = arith.addf %96, %97 : vector<2x32xf32>
    %99 = math.tanh %98 : vector<2x32xf32>
    %100 = arith.mulf %95, %99 : vector<2x32xf32>
    %c0_55 = arith.constant 0 : index
    %c0_56 = arith.constant 0 : index
    %101 = vector.load %arg6[%c0_55, %c0_56] : memref<2x32xf32, #tpu.memory_space<vmem>>, vector<2x32xf32>
    tpu.vector_store %arg6[%c0_55, %c0_56], %100 {strides = array<i32>} : memref<2x32xf32, #tpu.memory_space<vmem>>, vector<2x32xf32>,
    %c0_57 = arith.constant 0 : index
    %c0_58 = arith.constant 0 : index
    %102 = vector.load %arg7[%c0_57, %c0_58] : memref<2x32xf32, #tpu.memory_space<vmem>>, vector<2x32xf32>
    tpu.vector_store %arg7[%c0_57, %c0_58], %98 {strides = array<i32>} : memref<2x32xf32, #tpu.memory_space<vmem>>, vector<2x32xf32>,
    %103 = vector.shape_cast %100 : vector<2x32xf32> to vector<2x1x32xf32>
    %c0_59 = arith.constant 0 : index
    %104 = arith.index_cast %c2_i32 : i32 to index
    %c0_60 = arith.constant 0 : index
    %105 = vector.load %arg5[%c0_59, %104, %c0_60] : memref<2x8x32xf32, #tpu.memory_space<vmem>>, vector<2x1x32xf32>
    tpu.vector_store %arg5[%c0_59, %104, %c0_60], %103 {strides = array<i32>} : memref<2x8x32xf32, #tpu.memory_space<vmem>>, vector<2x1x32xf32>,
    %c3_i32 = arith.constant 3 : i32
    %c0_61 = arith.constant 0 : index
    %c0_62 = arith.constant 0 : index
    %106 = vector.load %arg6[%c0_61, %c0_62] : memref<2x32xf32, #tpu.memory_space<vmem>>, vector<2x32xf32>
    %c0_63 = arith.constant 0 : index
    %c0_64 = arith.constant 0 : index
    %107 = vector.load %arg7[%c0_63, %c0_64] : memref<2x32xf32, #tpu.memory_space<vmem>>, vector<2x32xf32>
    %c0_65 = arith.constant 0 : index
    %108 = arith.index_cast %c3_i32 : i32 to index
    %c0_66 = arith.constant 0 : index
    %109 = vector.load %arg8[%c0_65, %108, %c0_66] : memref<2x8x128xf32, #tpu.memory_space<vmem>>, vector<2x1x128xf32>
    %110 = vector.shape_cast %109 : vector<2x1x128xf32> to vector<2x128xf32>
    %111 = arith.truncf %106 : vector<2x32xf32> to vector<2x32xbf16>
    %cst_67 = arith.constant dense<0.000000e+00> : vector<2x128xf32>
    %112 = tpu.matmul %111, %21, %cst_67 {dimension_numbers = #tpu.dot_dimension_numbers<[1], [0], [0], [1], [0, 0, 1, 1], [], []>} : vector<2x32xbf16>, vector<32x128xbf16>, vector<2x128xf32> -> vector<2x128xf32>
    %113 = arith.addf %110, %112 : vector<2x128xf32>
    %114 = arith.negf %113 : vector<2x128xf32>
    %115 = math.exp %114 : vector<2x128xf32>
    %cst_68 = arith.constant 1.000000e+00 : f32
    %116 = vector.broadcast %cst_68 : f32 to vector<2x128xf32>
    %117 = arith.addf %116, %115 : vector<2x128xf32>
    %118 = arith.divf %116, %117 : vector<2x128xf32>
    %119 = math.tanh %113 : vector<2x128xf32>
    %120 = vector.extract_strided_slice %118 {offsets = [0, 0], sizes = [2, 32], strides = [1, 1]} : vector<2x128xf32> to vector<2x32xf32>
    %121 = vector.extract_strided_slice %118 {offsets = [0, 32], sizes = [2, 32], strides = [1, 1]} : vector<2x128xf32> to vector<2x32xf32>
    %122 = vector.extract_strided_slice %119 {offsets = [0, 64], sizes = [2, 32], strides = [1, 1]} : vector<2x128xf32> to vector<2x32xf32>
    %123 = vector.extract_strided_slice %118 {offsets = [0, 96], sizes = [2, 32], strides = [1, 1]} : vector<2x128xf32> to vector<2x32xf32>
    %124 = arith.mulf %121, %107 : vector<2x32xf32>
    %125 = arith.mulf %120, %122 : vector<2x32xf32>
    %126 = arith.addf %124, %125 : vector<2x32xf32>
    %127 = math.tanh %126 : vector<2x32xf32>
    %128 = arith.mulf %123, %127 : vector<2x32xf32>
    %c0_69 = arith.constant 0 : index
    %c0_70 = arith.constant 0 : index
    %129 = vector.load %arg6[%c0_69, %c0_70] : memref<2x32xf32, #tpu.memory_space<vmem>>, vector<2x32xf32>
    tpu.vector_store %arg6[%c0_69, %c0_70], %128 {strides = array<i32>} : memref<2x32xf32, #tpu.memory_space<vmem>>, vector<2x32xf32>,
    %c0_71 = arith.constant 0 : index
    %c0_72 = arith.constant 0 : index
    %130 = vector.load %arg7[%c0_71, %c0_72] : memref<2x32xf32, #tpu.memory_space<vmem>>, vector<2x32xf32>
    tpu.vector_store %arg7[%c0_71, %c0_72], %126 {strides = array<i32>} : memref<2x32xf32, #tpu.memory_space<vmem>>, vector<2x32xf32>,
    %131 = vector.shape_cast %128 : vector<2x32xf32> to vector<2x1x32xf32>
    %c0_73 = arith.constant 0 : index
    %132 = arith.index_cast %c3_i32 : i32 to index
    %c0_74 = arith.constant 0 : index
    %133 = vector.load %arg5[%c0_73, %132, %c0_74] : memref<2x8x32xf32, #tpu.memory_space<vmem>>, vector<2x1x32xf32>
    tpu.vector_store %arg5[%c0_73, %132, %c0_74], %131 {strides = array<i32>} : memref<2x8x32xf32, #tpu.memory_space<vmem>>, vector<2x1x32xf32>,
    %c4_i32 = arith.constant 4 : i32
    %c0_75 = arith.constant 0 : index
    %c0_76 = arith.constant 0 : index
    %134 = vector.load %arg6[%c0_75, %c0_76] : memref<2x32xf32, #tpu.memory_space<vmem>>, vector<2x32xf32>
    %c0_77 = arith.constant 0 : index
    %c0_78 = arith.constant 0 : index
    %135 = vector.load %arg7[%c0_77, %c0_78] : memref<2x32xf32, #tpu.memory_space<vmem>>, vector<2x32xf32>
    %c0_79 = arith.constant 0 : index
    %136 = arith.index_cast %c4_i32 : i32 to index
    %c0_80 = arith.constant 0 : index
    %137 = vector.load %arg8[%c0_79, %136, %c0_80] : memref<2x8x128xf32, #tpu.memory_space<vmem>>, vector<2x1x128xf32>
    %138 = vector.shape_cast %137 : vector<2x1x128xf32> to vector<2x128xf32>
    %139 = arith.truncf %134 : vector<2x32xf32> to vector<2x32xbf16>
    %cst_81 = arith.constant dense<0.000000e+00> : vector<2x128xf32>
    %140 = tpu.matmul %139, %21, %cst_81 {dimension_numbers = #tpu.dot_dimension_numbers<[1], [0], [0], [1], [0, 0, 1, 1], [], []>} : vector<2x32xbf16>, vector<32x128xbf16>, vector<2x128xf32> -> vector<2x128xf32>
    %141 = arith.addf %138, %140 : vector<2x128xf32>
    %142 = arith.negf %141 : vector<2x128xf32>
    %143 = math.exp %142 : vector<2x128xf32>
    %cst_82 = arith.constant 1.000000e+00 : f32
    %144 = vector.broadcast %cst_82 : f32 to vector<2x128xf32>
    %145 = arith.addf %144, %143 : vector<2x128xf32>
    %146 = arith.divf %144, %145 : vector<2x128xf32>
    %147 = math.tanh %141 : vector<2x128xf32>
    %148 = vector.extract_strided_slice %146 {offsets = [0, 0], sizes = [2, 32], strides = [1, 1]} : vector<2x128xf32> to vector<2x32xf32>
    %149 = vector.extract_strided_slice %146 {offsets = [0, 32], sizes = [2, 32], strides = [1, 1]} : vector<2x128xf32> to vector<2x32xf32>
    %150 = vector.extract_strided_slice %147 {offsets = [0, 64], sizes = [2, 32], strides = [1, 1]} : vector<2x128xf32> to vector<2x32xf32>
    %151 = vector.extract_strided_slice %146 {offsets = [0, 96], sizes = [2, 32], strides = [1, 1]} : vector<2x128xf32> to vector<2x32xf32>
    %152 = arith.mulf %149, %135 : vector<2x32xf32>
    %153 = arith.mulf %148, %150 : vector<2x32xf32>
    %154 = arith.addf %152, %153 : vector<2x32xf32>
    %155 = math.tanh %154 : vector<2x32xf32>
    %156 = arith.mulf %151, %155 : vector<2x32xf32>
    %c0_83 = arith.constant 0 : index
    %c0_84 = arith.constant 0 : index
    %157 = vector.load %arg6[%c0_83, %c0_84] : memref<2x32xf32, #tpu.memory_space<vmem>>, vector<2x32xf32>
    tpu.vector_store %arg6[%c0_83, %c0_84], %156 {strides = array<i32>} : memref<2x32xf32, #tpu.memory_space<vmem>>, vector<2x32xf32>,
    %c0_85 = arith.constant 0 : index
    %c0_86 = arith.constant 0 : index
    %158 = vector.load %arg7[%c0_85, %c0_86] : memref<2x32xf32, #tpu.memory_space<vmem>>, vector<2x32xf32>
    tpu.vector_store %arg7[%c0_85, %c0_86], %154 {strides = array<i32>} : memref<2x32xf32, #tpu.memory_space<vmem>>, vector<2x32xf32>,
    %159 = vector.shape_cast %156 : vector<2x32xf32> to vector<2x1x32xf32>
    %c0_87 = arith.constant 0 : index
    %160 = arith.index_cast %c4_i32 : i32 to index
    %c0_88 = arith.constant 0 : index
    %161 = vector.load %arg5[%c0_87, %160, %c0_88] : memref<2x8x32xf32, #tpu.memory_space<vmem>>, vector<2x1x32xf32>
    tpu.vector_store %arg5[%c0_87, %160, %c0_88], %159 {strides = array<i32>} : memref<2x8x32xf32, #tpu.memory_space<vmem>>, vector<2x1x32xf32>,
    %c5_i32 = arith.constant 5 : i32
    %c0_89 = arith.constant 0 : index
    %c0_90 = arith.constant 0 : index
    %162 = vector.load %arg6[%c0_89, %c0_90] : memref<2x32xf32, #tpu.memory_space<vmem>>, vector<2x32xf32>
    %c0_91 = arith.constant 0 : index
    %c0_92 = arith.constant 0 : index
    %163 = vector.load %arg7[%c0_91, %c0_92] : memref<2x32xf32, #tpu.memory_space<vmem>>, vector<2x32xf32>
    %c0_93 = arith.constant 0 : index
    %164 = arith.index_cast %c5_i32 : i32 to index
    %c0_94 = arith.constant 0 : index
    %165 = vector.load %arg8[%c0_93, %164, %c0_94] : memref<2x8x128xf32, #tpu.memory_space<vmem>>, vector<2x1x128xf32>
    %166 = vector.shape_cast %165 : vector<2x1x128xf32> to vector<2x128xf32>
    %167 = arith.truncf %162 : vector<2x32xf32> to vector<2x32xbf16>
    %cst_95 = arith.constant dense<0.000000e+00> : vector<2x128xf32>
    %168 = tpu.matmul %167, %21, %cst_95 {dimension_numbers = #tpu.dot_dimension_numbers<[1], [0], [0], [1], [0, 0, 1, 1], [], []>} : vector<2x32xbf16>, vector<32x128xbf16>, vector<2x128xf32> -> vector<2x128xf32>
    %169 = arith.addf %166, %168 : vector<2x128xf32>
    %170 = arith.negf %169 : vector<2x128xf32>
    %171 = math.exp %170 : vector<2x128xf32>
    %cst_96 = arith.constant 1.000000e+00 : f32
    %172 = vector.broadcast %cst_96 : f32 to vector<2x128xf32>
    %173 = arith.addf %172, %171 : vector<2x128xf32>
    %174 = arith.divf %172, %173 : vector<2x128xf32>
    %175 = math.tanh %169 : vector<2x128xf32>
    %176 = vector.extract_strided_slice %174 {offsets = [0, 0], sizes = [2, 32], strides = [1, 1]} : vector<2x128xf32> to vector<2x32xf32>
    %177 = vector.extract_strided_slice %174 {offsets = [0, 32], sizes = [2, 32], strides = [1, 1]} : vector<2x128xf32> to vector<2x32xf32>
    %178 = vector.extract_strided_slice %175 {offsets = [0, 64], sizes = [2, 32], strides = [1, 1]} : vector<2x128xf32> to vector<2x32xf32>
    %179 = vector.extract_strided_slice %174 {offsets = [0, 96], sizes = [2, 32], strides = [1, 1]} : vector<2x128xf32> to vector<2x32xf32>
    %180 = arith.mulf %177, %163 : vector<2x32xf32>
    %181 = arith.mulf %176, %178 : vector<2x32xf32>
    %182 = arith.addf %180, %181 : vector<2x32xf32>
    %183 = math.tanh %182 : vector<2x32xf32>
    %184 = arith.mulf %179, %183 : vector<2x32xf32>
    %c0_97 = arith.constant 0 : index
    %c0_98 = arith.constant 0 : index
    %185 = vector.load %arg6[%c0_97, %c0_98] : memref<2x32xf32, #tpu.memory_space<vmem>>, vector<2x32xf32>
    tpu.vector_store %arg6[%c0_97, %c0_98], %184 {strides = array<i32>} : memref<2x32xf32, #tpu.memory_space<vmem>>, vector<2x32xf32>,
    %c0_99 = arith.constant 0 : index
    %c0_100 = arith.constant 0 : index
    %186 = vector.load %arg7[%c0_99, %c0_100] : memref<2x32xf32, #tpu.memory_space<vmem>>, vector<2x32xf32>
    tpu.vector_store %arg7[%c0_99, %c0_100], %182 {strides = array<i32>} : memref<2x32xf32, #tpu.memory_space<vmem>>, vector<2x32xf32>,
    %187 = vector.shape_cast %184 : vector<2x32xf32> to vector<2x1x32xf32>
    %c0_101 = arith.constant 0 : index
    %188 = arith.index_cast %c5_i32 : i32 to index
    %c0_102 = arith.constant 0 : index
    %189 = vector.load %arg5[%c0_101, %188, %c0_102] : memref<2x8x32xf32, #tpu.memory_space<vmem>>, vector<2x1x32xf32>
    tpu.vector_store %arg5[%c0_101, %188, %c0_102], %187 {strides = array<i32>} : memref<2x8x32xf32, #tpu.memory_space<vmem>>, vector<2x1x32xf32>,
    %c6_i32 = arith.constant 6 : i32
    %c0_103 = arith.constant 0 : index
    %c0_104 = arith.constant 0 : index
    %190 = vector.load %arg6[%c0_103, %c0_104] : memref<2x32xf32, #tpu.memory_space<vmem>>, vector<2x32xf32>
    %c0_105 = arith.constant 0 : index
    %c0_106 = arith.constant 0 : index
    %191 = vector.load %arg7[%c0_105, %c0_106] : memref<2x32xf32, #tpu.memory_space<vmem>>, vector<2x32xf32>
    %c0_107 = arith.constant 0 : index
    %192 = arith.index_cast %c6_i32 : i32 to index
    %c0_108 = arith.constant 0 : index
    %193 = vector.load %arg8[%c0_107, %192, %c0_108] : memref<2x8x128xf32, #tpu.memory_space<vmem>>, vector<2x1x128xf32>
    %194 = vector.shape_cast %193 : vector<2x1x128xf32> to vector<2x128xf32>
    %195 = arith.truncf %190 : vector<2x32xf32> to vector<2x32xbf16>
    %cst_109 = arith.constant dense<0.000000e+00> : vector<2x128xf32>
    %196 = tpu.matmul %195, %21, %cst_109 {dimension_numbers = #tpu.dot_dimension_numbers<[1], [0], [0], [1], [0, 0, 1, 1], [], []>} : vector<2x32xbf16>, vector<32x128xbf16>, vector<2x128xf32> -> vector<2x128xf32>
    %197 = arith.addf %194, %196 : vector<2x128xf32>
    %198 = arith.negf %197 : vector<2x128xf32>
    %199 = math.exp %198 : vector<2x128xf32>
    %cst_110 = arith.constant 1.000000e+00 : f32
    %200 = vector.broadcast %cst_110 : f32 to vector<2x128xf32>
    %201 = arith.addf %200, %199 : vector<2x128xf32>
    %202 = arith.divf %200, %201 : vector<2x128xf32>
    %203 = math.tanh %197 : vector<2x128xf32>
    %204 = vector.extract_strided_slice %202 {offsets = [0, 0], sizes = [2, 32], strides = [1, 1]} : vector<2x128xf32> to vector<2x32xf32>
    %205 = vector.extract_strided_slice %202 {offsets = [0, 32], sizes = [2, 32], strides = [1, 1]} : vector<2x128xf32> to vector<2x32xf32>
    %206 = vector.extract_strided_slice %203 {offsets = [0, 64], sizes = [2, 32], strides = [1, 1]} : vector<2x128xf32> to vector<2x32xf32>
    %207 = vector.extract_strided_slice %202 {offsets = [0, 96], sizes = [2, 32], strides = [1, 1]} : vector<2x128xf32> to vector<2x32xf32>
    %208 = arith.mulf %205, %191 : vector<2x32xf32>
    %209 = arith.mulf %204, %206 : vector<2x32xf32>
    %210 = arith.addf %208, %209 : vector<2x32xf32>
    %211 = math.tanh %210 : vector<2x32xf32>
    %212 = arith.mulf %207, %211 : vector<2x32xf32>
    %c0_111 = arith.constant 0 : index
    %c0_112 = arith.constant 0 : index
    %213 = vector.load %arg6[%c0_111, %c0_112] : memref<2x32xf32, #tpu.memory_space<vmem>>, vector<2x32xf32>
    tpu.vector_store %arg6[%c0_111, %c0_112], %212 {strides = array<i32>} : memref<2x32xf32, #tpu.memory_space<vmem>>, vector<2x32xf32>,
    %c0_113 = arith.constant 0 : index
    %c0_114 = arith.constant 0 : index
    %214 = vector.load %arg7[%c0_113, %c0_114] : memref<2x32xf32, #tpu.memory_space<vmem>>, vector<2x32xf32>
    tpu.vector_store %arg7[%c0_113, %c0_114], %210 {strides = array<i32>} : memref<2x32xf32, #tpu.memory_space<vmem>>, vector<2x32xf32>,
    %215 = vector.shape_cast %212 : vector<2x32xf32> to vector<2x1x32xf32>
    %c0_115 = arith.constant 0 : index
    %216 = arith.index_cast %c6_i32 : i32 to index
    %c0_116 = arith.constant 0 : index
    %217 = vector.load %arg5[%c0_115, %216, %c0_116] : memref<2x8x32xf32, #tpu.memory_space<vmem>>, vector<2x1x32xf32>
    tpu.vector_store %arg5[%c0_115, %216, %c0_116], %215 {strides = array<i32>} : memref<2x8x32xf32, #tpu.memory_space<vmem>>, vector<2x1x32xf32>,
    %c7_i32 = arith.constant 7 : i32
    %c0_117 = arith.constant 0 : index
    %c0_118 = arith.constant 0 : index
    %218 = vector.load %arg6[%c0_117, %c0_118] : memref<2x32xf32, #tpu.memory_space<vmem>>, vector<2x32xf32>
    %c0_119 = arith.constant 0 : index
    %c0_120 = arith.constant 0 : index
    %219 = vector.load %arg7[%c0_119, %c0_120] : memref<2x32xf32, #tpu.memory_space<vmem>>, vector<2x32xf32>
    %c0_121 = arith.constant 0 : index
    %220 = arith.index_cast %c7_i32 : i32 to index
    %c0_122 = arith.constant 0 : index
    %221 = vector.load %arg8[%c0_121, %220, %c0_122] : memref<2x8x128xf32, #tpu.memory_space<vmem>>, vector<2x1x128xf32>
    %222 = vector.shape_cast %221 : vector<2x1x128xf32> to vector<2x128xf32>
    %223 = arith.truncf %218 : vector<2x32xf32> to vector<2x32xbf16>
    %cst_123 = arith.constant dense<0.000000e+00> : vector<2x128xf32>
    %224 = tpu.matmul %223, %21, %cst_123 {dimension_numbers = #tpu.dot_dimension_numbers<[1], [0], [0], [1], [0, 0, 1, 1], [], []>} : vector<2x32xbf16>, vector<32x128xbf16>, vector<2x128xf32> -> vector<2x128xf32>
    %225 = arith.addf %222, %224 : vector<2x128xf32>
    %226 = arith.negf %225 : vector<2x128xf32>
    %227 = math.exp %226 : vector<2x128xf32>
    %cst_124 = arith.constant 1.000000e+00 : f32
    %228 = vector.broadcast %cst_124 : f32 to vector<2x128xf32>
    %229 = arith.addf %228, %227 : vector<2x128xf32>
    %230 = arith.divf %228, %229 : vector<2x128xf32>
    %231 = math.tanh %225 : vector<2x128xf32>
    %232 = vector.extract_strided_slice %230 {offsets = [0, 0], sizes = [2, 32], strides = [1, 1]} : vector<2x128xf32> to vector<2x32xf32>
    %233 = vector.extract_strided_slice %230 {offsets = [0, 32], sizes = [2, 32], strides = [1, 1]} : vector<2x128xf32> to vector<2x32xf32>
    %234 = vector.extract_strided_slice %231 {offsets = [0, 64], sizes = [2, 32], strides = [1, 1]} : vector<2x128xf32> to vector<2x32xf32>
    %235 = vector.extract_strided_slice %230 {offsets = [0, 96], sizes = [2, 32], strides = [1, 1]} : vector<2x128xf32> to vector<2x32xf32>
    %236 = arith.mulf %233, %219 : vector<2x32xf32>
    %237 = arith.mulf %232, %234 : vector<2x32xf32>
    %238 = arith.addf %236, %237 : vector<2x32xf32>
    %239 = math.tanh %238 : vector<2x32xf32>
    %240 = arith.mulf %235, %239 : vector<2x32xf32>
    %c0_125 = arith.constant 0 : index
    %c0_126 = arith.constant 0 : index
    %241 = vector.load %arg6[%c0_125, %c0_126] : memref<2x32xf32, #tpu.memory_space<vmem>>, vector<2x32xf32>
    tpu.vector_store %arg6[%c0_125, %c0_126], %240 {strides = array<i32>} : memref<2x32xf32, #tpu.memory_space<vmem>>, vector<2x32xf32>,
    %c0_127 = arith.constant 0 : index
    %c0_128 = arith.constant 0 : index
    %242 = vector.load %arg7[%c0_127, %c0_128] : memref<2x32xf32, #tpu.memory_space<vmem>>, vector<2x32xf32>
    tpu.vector_store %arg7[%c0_127, %c0_128], %238 {strides = array<i32>} : memref<2x32xf32, #tpu.memory_space<vmem>>, vector<2x32xf32>,
    %243 = vector.shape_cast %240 : vector<2x32xf32> to vector<2x1x32xf32>
    %c0_129 = arith.constant 0 : index
    %244 = arith.index_cast %c7_i32 : i32 to index
    %c0_130 = arith.constant 0 : index
    %245 = vector.load %arg5[%c0_129, %244, %c0_130] : memref<2x8x32xf32, #tpu.memory_space<vmem>>, vector<2x1x32xf32>
    tpu.vector_store %arg5[%c0_129, %244, %c0_130], %243 {strides = array<i32>} : memref<2x8x32xf32, #tpu.memory_space<vmem>>, vector<2x1x32xf32>,
    %c8_i32 = arith.constant 8 : i32
    return
  }
  func.func @transform_0(%arg0: i32) -> (i32, i32, i32) {
    %c0_i32 = arith.constant 0 : i32
    %c0_i32_0 = arith.constant 0 : i32
    %c0_i32_1 = arith.constant 0 : i32
    return %c0_i32, %arg0, %c0_i32_0 : i32, i32, i32
  }
  func.func @transform_1(%arg0: i32) -> (i32, i32) {
    %c0_i32 = arith.constant 0 : i32
    %c0_i32_0 = arith.constant 0 : i32
    %c0_i32_1 = arith.constant 0 : i32
    return %c0_i32, %c0_i32_0 : i32, i32
  }
  func.func @transform_2(%arg0: i32) -> (i32, i32) {
    %c0_i32 = arith.constant 0 : i32
    %c0_i32_0 = arith.constant 0 : i32
    %c0_i32_1 = arith.constant 0 : i32
    return %c0_i32, %c0_i32_0 : i32, i32
  }
  func.func @transform_3(%arg0: i32) -> (i32, i32) {
    %c0_i32 = arith.constant 0 : i32
    %c0_i32_0 = arith.constant 0 : i32
    %c0_i32_1 = arith.constant 0 : i32
    return %c0_i32, %c0_i32_0 : i32, i32
  }
  func.func @transform_4(%arg0: i32) -> (i32, i32, i32) {
    %c0_i32 = arith.constant 0 : i32
    %c0_i32_0 = arith.constant 0 : i32
    %c0_i32_1 = arith.constant 0 : i32
    return %c0_i32, %arg0, %c0_i32_0 : i32, i32, i32
  }
  func.func @transform_5(%arg0: i32) -> (i32, i32) {
    %c0_i32 = arith.constant 0 : i32
    %c0_i32_0 = arith.constant 0 : i32
    %c0_i32_1 = arith.constant 0 : i32
    return %c0_i32, %c0_i32_0 : i32, i32
  }
  func.func @transform_6(%arg0: i32) -> (i32, i32) {
    %c0_i32 = arith.constant 0 : i32
    %c0_i32_0 = arith.constant 0 : i32
    %c0_i32_1 = arith.constant 0 : i32
    return %c0_i32, %c0_i32_0 : i32, i32
  }
}

</mosaic_0001>

<llo_original>
// kernel: tpu_custom_call.1
$region0: #{tpu_custom_call.1}
  #allocation0 [shape = 'u32[]', space=smem, size = 0x4, offset = 0x4, fixed_abs, tag = 'smem constant byte address 0x4 - core index']
  #allocation1 [shape = 'u32[144,128]{1,0:T(1,128)}', space=vmem, size = 0x12000, scoped, tag = 'internal scratch']
  #allocation2 [shape = 'f32[2,8,128]{2,1,0:T(8,128)}', space=vmem, size = 0x2000, scoped, tag = 'scratch operand']
  %s0 = inlined_call_operand.hbm [shape: bf16[2,8,32], index: 0, kind: input, shape index: {}]
  %s1 = inlined_call_operand.hbm [shape: bf16[32,128], index: 1, kind: input, shape index: {}]
  %s2 = inlined_call_operand.hbm [shape: bf16[32,128], index: 2, kind: input, shape index: {}]
  %s3 = inlined_call_operand.vmem [shape: f32[1,128], index: 3, kind: input, shape index: {}]
  %s4 = inlined_call_operand.hbm [shape: f32[2,8,32], index: 4, kind: output, shape index: {0}]
  %s5 = inlined_call_operand.hbm [shape: f32[2,32], index: 5, kind: output, shape index: {1}]
  %s6 = inlined_call_operand.hbm [shape: f32[2,32], index: 6, kind: output, shape index: {2}]
  %7 = xla_tuple %s4, %s5, %s6
  %s8 = sld [smem:[#allocation0]]
  $region58: #{tpu_custom_call.1} parent=0
    _
  %s10 = ssub.s32 1, %s8
  %s11 = scalar_select 0, %s10, %s8
  $region1: #{tpu_custom_call.1} parent=0
    #allocation3 [shape = 'u8[4096]{0}', space=vmem, size = 0x1000, scoped, tag = 'input window, operand 0, single buffered']
    #allocation4 [shape = 's32[1]{0}', space=sflag, size = 0x4, scoped, tag = 'scoped memory for tpu_custom_call.1']
    #allocation5 [shape = 's32[1]{0}', space=sflag, size = 0x4, scoped, tag = 'scoped memory for tpu_custom_call.1']
    #allocation6 [shape = 'u8[8192]{0}', space=vmem, size = 0x2000, scoped, tag = 'input window, operand 1, single buffered']
    #allocation7 [shape = 's32[1]{0}', space=sflag, size = 0x4, scoped, tag = 'scoped memory for tpu_custom_call.1']
    #allocation8 [shape = 'u8[8192]{0}', space=vmem, size = 0x2000, scoped, tag = 'input window, operand 2, single buffered']
    #allocation9 [shape = 'u8[8192]{0}', space=vmem, size = 0x2000, scoped, tag = 'output window, operand 0, single buffered']
    #allocation10 [shape = 'u8[1024]{0}', space=vmem, size = 0x400, scoped, tag = 'output window, operand 1, single buffered']
    #allocation11 [shape = 's32[1]{0}', space=sflag, size = 0x4, scoped, tag = 'scoped memory for tpu_custom_call.1']
    #allocation12 [shape = 'u8[1024]{0}', space=vmem, size = 0x400, scoped, tag = 'output window, operand 2, single buffered']
    %12 = vsyncpa [#allocation4], 0
    %13 = vsyncpa [#allocation7], 0
    %14 = vsyncpa [#allocation5], 0
    %15 = vsyncpa [#allocation11], 0
    // Predicated region
    $region2: #{tpu_custom_call.1} parent=1 // pred_check
      _
    $region3: #{tpu_custom_call.1} parent=1 // pred_check_branch
      %17 = sbr.rel (0) target = $region5
    $region4: #{tpu_custom_call.1} parent=1 // pred_region
      %s19 = ssub.s32 128, 128
      %20 = vsyncadd [#allocation4], %s19
      %s21 = sshll.u32 [#allocation3], 4
      %s22 = int_to_ptr.vmem [resolvable:$true] %s21
      %27 = dma.hbm_to_vmem [thread:$0]  %s0, 128, %s22, [#allocation4], 64, 64, 4
    $region5: #{tpu_custom_call.1} parent=1 // pred_fallthru
      _
    // Predicated region
    $region6: #{tpu_custom_call.1} parent=1 // pred_check
      _
    $region7: #{tpu_custom_call.1} parent=1 // pred_check_branch
      %29 = sbr.rel (0) target = $region9
    $region8: #{tpu_custom_call.1} parent=1 // pred_region
      %s31 = ssub.s32 256, 256
      %32 = vsyncadd [#allocation7], %s31
      %s33 = sshll.u32 [#allocation6], 4
      %s34 = int_to_ptr.vmem [resolvable:$true] %s33
      %39 = dma.hbm_to_vmem [thread:$0]  %s1, 256, %s34, [#allocation7], 64, 64, 4
    $region9: #{tpu_custom_call.1} parent=1 // pred_fallthru
      _
    // Predicated region
    $region10: #{tpu_custom_call.1} parent=1 // pred_check
      _
    $region11: #{tpu_custom_call.1} parent=1 // pred_check_branch
      %41 = sbr.rel (0) target = $region13
    $region12: #{tpu_custom_call.1} parent=1 // pred_region
      %s43 = ssub.s32 256, 256
      %44 = vsyncadd [#allocation7], %s43
      %s45 = sshll.u32 [#allocation8], 4
      %s46 = int_to_ptr.vmem [resolvable:$true] %s45
      %51 = dma.hbm_to_vmem [thread:$0]  %s2, 256, %s46, [#allocation7], 64, 64, 4
    $region13: #{tpu_custom_call.1} parent=1 // pred_fallthru
      _
    // Predicated region
    $region14: #{tpu_custom_call.1} parent=1 // pred_check
      _
    $region15: #{tpu_custom_call.1} parent=1 // pred_check_branch
      %53 = sbr.rel (0) target = $region17
    $region16: #{tpu_custom_call.1} parent=1 // pred_region
      _
    $region17: #{tpu_custom_call.1} parent=1 // pred_fallthru
      _
    // Predicated region
    $region18: #{tpu_custom_call.1} parent=1 // pred_check
      _
    $region19: #{tpu_custom_call.1} parent=1 // pred_check_branch
      %55 = sbr.rel (0) target = $region21
    $region20: #{tpu_custom_call.1} parent=1 // pred_region
      %56 = dma.done [#allocation4], 128
    $region21: #{tpu_custom_call.1} parent=1 // pred_fallthru
      _
    // Predicated region
    $region22: #{tpu_custom_call.1} parent=1 // pred_check
      _
    $region23: #{tpu_custom_call.1} parent=1 // pred_check_branch
      %58 = sbr.rel (0) target = $region25
    $region24: #{tpu_custom_call.1} parent=1 // pred_region
      %59 = dma.done [#allocation7], 256
    $region25: #{tpu_custom_call.1} parent=1 // pred_fallthru
      _
    // Predicated region
    $region26: #{tpu_custom_call.1} parent=1 // pred_check
      _
    $region27: #{tpu_custom_call.1} parent=1 // pred_check_branch
      %61 = sbr.rel (0) target = $region29
    $region28: #{tpu_custom_call.1} parent=1 // pred_region
      %62 = dma.done [#allocation7], 256
    $region29: #{tpu_custom_call.1} parent=1 // pred_fallthru
      _
    %p64 = scmp.eq.s32.totalorder 0, 0
    // Predicated region
    $region30: #{tpu_custom_call.1} parent=1 // pred_check
      %p65 = pneg %p64
    $region31: #{tpu_custom_call.1} parent=1 // pred_check_branch
      %67 = sbr.rel (%p65) target = $region33
    $region32: #{tpu_custom_call.1} parent=1 // pred_region
      %vm68 = vcmask 254976
      %69 = vst.msk [vmem:[#allocation10] sm:$0x3] %vm68, 0.0
      %70 = vst.msk [vmem:[#allocation12] sm:$0x3] %vm68, 0.0
    $region33: #{tpu_custom_call.1} parent=1 // pred_fallthru
      _
    %v71 = vld [vmem:[#allocation6] sm:$0xf]
    %v72 = vld [vmem:[#allocation6 + $0x4] sm:$0xf]
    %v73 = vld [vmem:[#allocation6 + $0x8] sm:$0xf]
    %v74 = vld [vmem:[#allocation6 + $0xc] sm:$0xf]
    %v75 = vld [vmem:[%s3] sm:$0x1]
    %v76 = vld [vmem:[#allocation3] sm:$0xf]
    %v78 = vlaneseq
    %v79 = vshrl.u32 %v78, 7
    %v80 = vsub.s32 0, %v79
    %v81 = vrot.slane %v75, %v80
    %v87 = vunpack.c.l.b16 %v71
    %v88 = vunpack.c.l.b16 %v72
    %v89 = vunpack.c.l.b16 %v73
    %v90 = vunpack.c.l.b16 %v74
    %v91 = vpack.c.b16 %v88, %v87
    %v92 = vpack.c.b16 %v90, %v89
    %vm95 = vcmask 261120
    %v97 = vsel %vm95, %v76, 0
    %99 = vmatprep.subr.bf16.mxu0 0
    %100 = vmatpush1.bf16.msra.mxu0 %v91
    %101 = vmatprep.subr.bf16.mxu0 0
    %102 = vmatpush1.bf16.msra.mxu0 %v92
    %103 = vmatprep.subr.bf16.mxu0 0
    %104 = vmatpush1.bf16.msra.mxu0 0
    %105 = vmatprep.subr.bf16.mxu0 0
    %106 = vmatpush1.bf16.msra.mxu0 0
    %107 = vmatprep.subr.bf16.mxu0 0
    %108 = vmatpush1.bf16.msra.mxu0 0
    %109 = vmatprep.subr.bf16.mxu0 0
    %110 = vmatpush1.bf16.msra.mxu0 0
    %111 = vmatprep.subr.bf16.mxu0 0
    %112 = vmatpush1.bf16.msra.mxu0 0
    %113 = vmatprep.subr.bf16.mxu0 0
    %114 = vmatpush1.bf16.msra.mxu0 0
    %115 = vmatprep.subr.bf16.mxu0 0
    %116 = vmatpush1.bf16.msra.mxu0 0
    %117 = vmatprep.subr.bf16.mxu0 0
    %118 = vmatpush1.bf16.msra.mxu0 0
    %119 = vmatprep.subr.bf16.mxu0 0
    %120 = vmatpush1.bf16.msra.mxu0 0
    %121 = vmatprep.subr.bf16.mxu0 0
    %122 = vmatpush1.bf16.msra.mxu0 0
    %123 = vmatprep.subr.bf16.mxu0 0
    %124 = vmatpush1.bf16.msra.mxu0 0
    %125 = vmatprep.subr.bf16.mxu0 0
    %126 = vmatpush1.bf16.msra.mxu0 0
    %127 = vmatprep.subr.bf16.mxu0 0
    %128 = vmatpush1.bf16.msra.mxu0 0
    %129 = vmatprep.subr.bf16.mxu0 0
    %130 = vmatpush1.bf16.msra.mxu0 0
    %131 = vmatprep.mubr.bf16.mxu0 0
    %132 = vmatmul.mubr.bf16.gmra.mrb[0].mxu0 %v97
    %v133 = vpop.f32.mrb[0].mxu0
    %v134 = vadd.f32 %v81, %v133
    %v135 = vpop.f32.mrb[0].mxu0
    %v136 = vpop.f32.mrb[0].mxu0
    %v137 = vpop.f32.mrb[0].mxu0
    %138 = vdwg.mxu0
    %139 = vst [vmem:[#allocation2] sm:$0xff] %v134
    %s140 = scalar_lea.vmem [#allocation3], 4
    %v141 = vld [vmem:[%s140] sm:$0xf]
    %v143 = vsel %vm95, %v141, 0
    %145 = vmatprep.subr.bf16.mxu0 0
    %146 = vmatpush1.bf16.msra.mxu0 %v91
    %147 = vmatprep.subr.bf16.mxu0 0
    %148 = vmatpush1.bf16.msra.mxu0 %v92
    %149 = vmatprep.subr.bf16.mxu0 0
    %150 = vmatpush1.bf16.msra.mxu0 0
    %151 = vmatprep.subr.bf16.mxu0 0
    %152 = vmatpush1.bf16.msra.mxu0 0
    %153 = vmatprep.subr.bf16.mxu0 0
    %154 = vmatpush1.bf16.msra.mxu0 0
    %155 = vmatprep.subr.bf16.mxu0 0
    %156 = vmatpush1.bf16.msra.mxu0 0
    %157 = vmatprep.subr.bf16.mxu0 0
    %158 = vmatpush1.bf16.msra.mxu0 0
    %159 = vmatprep.subr.bf16.mxu0 0
    %160 = vmatpush1.bf16.msra.mxu0 0
    %161 = vmatprep.subr.bf16.mxu0 0
    %162 = vmatpush1.bf16.msra.mxu0 0
    %163 = vmatprep.subr.bf16.mxu0 0
    %164 = vmatpush1.bf16.msra.mxu0 0
    %165 = vmatprep.subr.bf16.mxu0 0
    %166 = vmatpush1.bf16.msra.mxu0 0
    %167 = vmatprep.subr.bf16.mxu0 0
    %168 = vmatpush1.bf16.msra.mxu0 0
    %169 = vmatprep.subr.bf16.mxu0 0
    %170 = vmatpush1.bf16.msra.mxu0 0
    %171 = vmatprep.subr.bf16.mxu0 0
    %172 = vmatpush1.bf16.msra.mxu0 0
    %173 = vmatprep.subr.bf16.mxu0 0
    %174 = vmatpush1.bf16.msra.mxu0 0
    %175 = vmatprep.subr.bf16.mxu0 0
    %176 = vmatpush1.bf16.msra.mxu0 0
    %177 = vmatprep.mubr.bf16.mxu0 0
    %178 = vmatmul.mubr.bf16.gmra.mrb[0].mxu0 %v143
    %v179 = vpop.f32.mrb[0].mxu0
    %v180 = vadd.f32 %v81, %v179
    %v181 = vpop.f32.mrb[0].mxu0
    %v182 = vpop.f32.mrb[0].mxu0
    %v183 = vpop.f32.mrb[0].mxu0
    %184 = vdwg.mxu0
    %s185 = scalar_lea.vmem [#allocation2], 8
    %186 = vst [vmem:[%s185] sm:$0xff] %v180
    %v187 = vld [vmem:[#allocation8] sm:$0xf]
    %v188 = vld [vmem:[#allocation8 + $0x4] sm:$0xf]
    %v189 = vld [vmem:[#allocation8 + $0x8] sm:$0xf]
    %v190 = vld [vmem:[#allocation8 + $0xc] sm:$0xf]
    %v191 = vld [vmem:[#allocation10] sm:$0x3]
    %v192 = vld [vmem:[#allocation12] sm:$0x3]
    %v193 = vld [vmem:[#allocation2] sm:$0x1]
    %v194 = vld [vmem:[#allocation2 + $0x8] sm:$0x1]
    %v195 = vpack.c.bf16 %v191, %v191
    %v200 = vunpack.c.l.b16 %v187
    %v201 = vunpack.c.l.b16 %v188
    %v202 = vunpack.c.l.b16 %v189
    %v203 = vunpack.c.l.b16 %v190
    %v204 = vpack.c.b16 %v201, %v200
    %v205 = vpack.c.b16 %v203, %v202
    %v209 = vsel %vm95, %v195, 0
    %211 = vmatprep.subr.bf16.mxu0 0
    %212 = vmatpush1.bf16.msra.mxu0 %v204
    %213 = vmatprep.subr.bf16.mxu0 0
    %214 = vmatpush1.bf16.msra.mxu0 %v205
    %215 = vmatprep.subr.bf16.mxu0 0
    %216 = vmatpush1.bf16.msra.mxu0 0
    %217 = vmatprep.subr.bf16.mxu0 0
    %218 = vmatpush1.bf16.msra.mxu0 0
    %219 = vmatprep.subr.bf16.mxu0 0
    %220 = vmatpush1.bf16.msra.mxu0 0
    %221 = vmatprep.subr.bf16.mxu0 0
    %222 = vmatpush1.bf16.msra.mxu0 0
    %223 = vmatprep.subr.bf16.mxu0 0
    %224 = vmatpush1.bf16.msra.mxu0 0
    %225 = vmatprep.subr.bf16.mxu0 0
    %226 = vmatpush1.bf16.msra.mxu0 0
    %227 = vmatprep.subr.bf16.mxu0 0
    %228 = vmatpush1.bf16.msra.mxu0 0
    %229 = vmatprep.subr.bf16.mxu0 0
    %230 = vmatpush1.bf16.msra.mxu0 0
    %231 = vmatprep.subr.bf16.mxu0 0
    %232 = vmatpush1.bf16.msra.mxu0 0
    %233 = vmatprep.subr.bf16.mxu0 0
    %234 = vmatpush1.bf16.msra.mxu0 0
    %235 = vmatprep.subr.bf16.mxu0 0
    %236 = vmatpush1.bf16.msra.mxu0 0
    %237 = vmatprep.subr.bf16.mxu0 0
    %238 = vmatpush1.bf16.msra.mxu0 0
    %239 = vmatprep.subr.bf16.mxu0 0
    %240 = vmatpush1.bf16.msra.mxu0 0
    %241 = vmatprep.subr.bf16.mxu0 0
    %242 = vmatpush1.bf16.msra.mxu0 0
    %243 = vmatprep.mubr.bf16.mxu0 0
    %244 = vmatmul.mubr.bf16.gmra.mrb[0].mxu0 %v209
    %v245 = vpop.f32.mrb[0].mxu0
    %v246 = vadd.f32 0.0, %v245
    %v247 = vpop.f32.mrb[0].mxu0
    %v248 = vpop.f32.mrb[0].mxu0
    %v249 = vpop.f32.mrb[0].mxu0
    %250 = vdwg.mxu0
    %v252 = vrot.slane %v246, 1
    %v255 = vadd.f32 %v193, %v246
    %v256 = vadd.f32 %v194, %v252
    %v257 = vxor.u32 %v255, 2147483648
    %v258 = vxor.u32 %v256, 2147483648
    %v259 = vmul.f32 %v257, 1.442695
    %v260 = vpow.pop %v259
    %v261 = vmul.f32 %v258, 1.442695
    %v262 = vpow.pop %v261
    %v263 = vadd.f32 %v260, 1.0
    %v264 = vadd.f32 %v262, 1.0
    %v265 = vrcp.pop %v263
    %v266 = vmul.f32 1.0, %v265
    %v267 = vrcp.pop %v264
    %v268 = vmul.f32 1.0, %v267
    %v269 = vtanh.pop %v255
    %v270 = vtanh.pop %v256
    %v272 = vrot.slane %v192, 1
    %273 = vrot.lane.b32.xlu0 %v192, 32
    %v274 = vpop.permute.xlu0 %273
    %275 = vrot.lane.b32.xlu0 %v272, 32
    %v276 = vpop.permute.xlu0 %275
    %v279 = vmul.f32 %v266, %v274
    %v280 = vmul.f32 %v268, %v276
    %283 = vrot.lane.b32.xlu0 %v269, 64
    %v284 = vpop.permute.xlu0 %283
    %285 = vrot.lane.b32.xlu0 %v270, 64
    %v286 = vpop.permute.xlu0 %285
    %v289 = vmul.f32 %v266, %v284
    %v290 = vmul.f32 %v268, %v286
    %293 = vrot.lane.b32.xlu0 %v289, 32
    %v294 = vpop.permute.xlu0 %293
    %295 = vrot.lane.b32.xlu0 %v290, 32
    %v296 = vpop.permute.xlu0 %295
    %v299 = vadd.f32 %v279, %v294
    %v300 = vadd.f32 %v280, %v296
    %v301 = vtanh.pop %v299
    %v302 = vtanh.pop %v300
    %305 = vrot.lane.b32.xlu0 %v301, 64
    %v306 = vpop.permute.xlu0 %305
    %307 = vrot.lane.b32.xlu0 %v302, 64
    %v308 = vpop.permute.xlu0 %307
    %v311 = vmul.f32 %v266, %v306
    %v312 = vmul.f32 %v268, %v308
    %v315 = vrot.slane %v312, 7
    %vm316 = vcmask 1041409
    %v317 = vsel %vm316, %v315, %v311
    %318 = vrot.lane.b32.xlu0 %v317, 32
    %v319 = vpop.permute.xlu0 %318
    %vm321 = vcmask 254976
    %322 = vst.msk [vmem:[#allocation10] sm:$0x3] %vm321, %v319
    %v325 = vrot.slane %v300, 7
    %v326 = vsel %vm316, %v325, %v299
    %327 = vrot.lane.b32.xlu0 %v326, 96
    %v328 = vpop.permute.xlu0 %327
    %330 = vst.msk [vmem:[#allocation12] sm:$0x3] %vm321, %v328
    %331 = vrot.lane.b32.xlu0 %v311, 32
    %v332 = vpop.permute.xlu0 %331
    %333 = vrot.lane.b32.xlu0 %v312, 32
    %v334 = vpop.permute.xlu0 %333
    %vm337 = vcmask 253952
    %338 = vst.msk [vmem:[#allocation9] sm:$0x1] %vm337, %v332
    %339 = vst.msk [vmem:[#allocation9 + $0x8] sm:$0x1] %vm337, %v334
    %v340 = vld [vmem:[#allocation10] sm:$0x3]
    %v341 = vld [vmem:[#allocation12] sm:$0x3]
    %v342 = vld [vmem:[#allocation2 + $0x1] sm:$0x1]
    %v343 = vld [vmem:[#allocation2 + $0x9] sm:$0x1]
    %v344 = vpack.c.bf16 %v340, %v340
    %v346 = vsel %vm95, %v344, 0
    %348 = vmatprep.subr.bf16.mxu0 0
    %349 = vmatpush1.bf16.msra.mxu0 %v204
    %350 = vmatprep.subr.bf16.mxu0 0
    %351 = vmatpush1.bf16.msra.mxu0 %v205
    %352 = vmatprep.subr.bf16.mxu0 0
    %353 = vmatpush1.bf16.msra.mxu0 0
    %354 = vmatprep.subr.bf16.mxu0 0
    %355 = vmatpush1.bf16.msra.mxu0 0
    %356 = vmatprep.subr.bf16.mxu0 0
    %357 = vmatpush1.bf16.msra.mxu0 0
    %358 = vmatprep.subr.bf16.mxu0 0
    %359 = vmatpush1.bf16.msra.mxu0 0
    %360 = vmatprep.subr.bf16.mxu0 0
    %361 = vmatpush1.bf16.msra.mxu0 0
    %362 = vmatprep.subr.bf16.mxu0 0
    %363 = vmatpush1.bf16.msra.mxu0 0
    %364 = vmatprep.subr.bf16.mxu0 0
    %365 = vmatpush1.bf16.msra.mxu0 0
    %366 = vmatprep.subr.bf16.mxu0 0
    %367 = vmatpush1.bf16.msra.mxu0 0
    %368 = vmatprep.subr.bf16.mxu0 0
    %369 = vmatpush1.bf16.msra.mxu0 0
    %370 = vmatprep.subr.bf16.mxu0 0
    %371 = vmatpush1.bf16.msra.mxu0 0
    %372 = vmatprep.subr.bf16.mxu0 0
    %373 = vmatpush1.bf16.msra.mxu0 0
    %374 = vmatprep.subr.bf16.mxu0 0
    %375 = vmatpush1.bf16.msra.mxu0 0
    %376 = vmatprep.subr.bf16.mxu0 0
    %377 = vmatpush1.bf16.msra.mxu0 0
    %378 = vmatprep.subr.bf16.mxu0 0
    %379 = vmatpush1.bf16.msra.mxu0 0
    %380 = vmatprep.mubr.bf16.mxu0 0
    %381 = vmatmul.mubr.bf16.gmra.mrb[0].mxu0 %v346
    %v382 = vpop.f32.mrb[0].mxu0
    %v383 = vadd.f32 0.0, %v382
    %v384 = vpop.f32.mrb[0].mxu0
    %v385 = vpop.f32.mrb[0].mxu0
    %v386 = vpop.f32.mrb[0].mxu0
    %387 = vdwg.mxu0
    %v389 = vrot.slane %v383, 1
    %v392 = vadd.f32 %v342, %v383
    %v393 = vadd.f32 %v343, %v389
    %v394 = vxor.u32 %v392, 2147483648
    %v395 = vxor.u32 %v393, 2147483648
    %v396 = vmul.f32 %v394, 1.442695
    %v397 = vpow.pop %v396
    %v398 = vmul.f32 %v395, 1.442695
    %v399 = vpow.pop %v398
    %v400 = vadd.f32 %v397, 1.0
    %v401 = vadd.f32 %v399, 1.0
    %v402 = vrcp.pop %v400
    %v403 = vmul.f32 1.0, %v402
    %v404 = vrcp.pop %v401
    %v405 = vmul.f32 1.0, %v404
    %v406 = vtanh.pop %v392
    %v407 = vtanh.pop %v393
    %v409 = vrot.slane %v341, 1
    %410 = vrot.lane.b32.xlu0 %v341, 32
    %v411 = vpop.permute.xlu0 %410
    %412 = vrot.lane.b32.xlu0 %v409, 32
    %v413 = vpop.permute.xlu0 %412
    %v416 = vmul.f32 %v403, %v411
    %v417 = vmul.f32 %v405, %v413
    %420 = vrot.lane.b32.xlu0 %v406, 64
    %v421 = vpop.permute.xlu0 %420
    %422 = vrot.lane.b32.xlu0 %v407, 64
    %v423 = vpop.permute.xlu0 %422
    %v426 = vmul.f32 %v403, %v421
    %v427 = vmul.f32 %v405, %v423
    %430 = vrot.lane.b32.xlu0 %v426, 32
    %v431 = vpop.permute.xlu0 %430
    %432 = vrot.lane.b32.xlu0 %v427, 32
    %v433 = vpop.permute.xlu0 %432
    %v436 = vadd.f32 %v416, %v431
    %v437 = vadd.f32 %v417, %v433
    %v438 = vtanh.pop %v436
    %v439 = vtanh.pop %v437
    %442 = vrot.lane.b32.xlu0 %v438, 64
    %v443 = vpop.permute.xlu0 %442
    %444 = vrot.lane.b32.xlu0 %v439, 64
    %v445 = vpop.permute.xlu0 %444
    %v448 = vmul.f32 %v403, %v443
    %v449 = vmul.f32 %v405, %v445
    %v452 = vrot.slane %v449, 7
    %v453 = vsel %vm316, %v452, %v448
    %454 = vrot.lane.b32.xlu0 %v453, 32
    %v455 = vpop.permute.xlu0 %454
    %457 = vst.msk [vmem:[#allocation10] sm:$0x3] %vm321, %v455
    %v460 = vrot.slane %v437, 7
    %v461 = vsel %vm316, %v460, %v436
    %462 = vrot.lane.b32.xlu0 %v461, 96
    %v463 = vpop.permute.xlu0 %462
    %465 = vst.msk [vmem:[#allocation12] sm:$0x3] %vm321, %v463
    %466 = vrot.lane.b32.xlu0 %v448, 32
    %v467 = vpop.permute.xlu0 %466
    %468 = vrot.lane.b32.xlu0 %v449, 32
    %v469 = vpop.permute.xlu0 %468
    %472 = vst.msk [vmem:[#allocation9 + $0x1] sm:$0x1] %vm337, %v467
    %473 = vst.msk [vmem:[#allocation9 + $0x9] sm:$0x1] %vm337, %v469
    %v474 = vld [vmem:[#allocation10] sm:$0x3]
    %v475 = vld [vmem:[#allocation12] sm:$0x3]
    %v476 = vld [vmem:[#allocation2 + $0x2] sm:$0x1]
    %v477 = vld [vmem:[#allocation2 + $0xa] sm:$0x1]
    %v478 = vpack.c.bf16 %v474, %v474
    %v480 = vsel %vm95, %v478, 0
    %482 = vmatprep.subr.bf16.mxu0 0
    %483 = vmatpush1.bf16.msra.mxu0 %v204
    %484 = vmatprep.subr.bf16.mxu0 0
    %485 = vmatpush1.bf16.msra.mxu0 %v205
    %486 = vmatprep.subr.bf16.mxu0 0
    %487 = vmatpush1.bf16.msra.mxu0 0
    %488 = vmatprep.subr.bf16.mxu0 0
    %489 = vmatpush1.bf16.msra.mxu0 0
    %490 = vmatprep.subr.bf16.mxu0 0
    %491 = vmatpush1.bf16.msra.mxu0 0
    %492 = vmatprep.subr.bf16.mxu0 0
    %493 = vmatpush1.bf16.msra.mxu0 0
    %494 = vmatprep.subr.bf16.mxu0 0
    %495 = vmatpush1.bf16.msra.mxu0 0
    %496 = vmatprep.subr.bf16.mxu0 0
    %497 = vmatpush1.bf16.msra.mxu0 0
    %498 = vmatprep.subr.bf16.mxu0 0
    %499 = vmatpush1.bf16.msra.mxu0 0
    %500 = vmatprep.subr.bf16.mxu0 0
    %501 = vmatpush1.bf16.msra.mxu0 0
    %502 = vmatprep.subr.bf16.mxu0 0
    %503 = vmatpush1.bf16.msra.mxu0 0
    %504 = vmatprep.subr.bf16.mxu0 0
    %505 = vmatpush1.bf16.msra.mxu0 0
    %506 = vmatprep.subr.bf16.mxu0 0
    %507 = vmatpush1.bf16.msra.mxu0 0
    %508 = vmatprep.subr.bf16.mxu0 0
    %509 = vmatpush1.bf16.msra.mxu0 0
    %510 = vmatprep.subr.bf16.mxu0 0
    %511 = vmatpush1.bf16.msra.mxu0 0
    %512 = vmatprep.subr.bf16.mxu0 0
    %513 = vmatpush1.bf16.msra.mxu0 0
    %514 = vmatprep.mubr.bf16.mxu0 0
    %515 = vmatmul.mubr.bf16.gmra.mrb[0].mxu0 %v480
    %v516 = vpop.f32.mrb[0].mxu0
    %v517 = vadd.f32 0.0, %v516
    %v518 = vpop.f32.mrb[0].mxu0
    %v519 = vpop.f32.mrb[0].mxu0
    %v520 = vpop.f32.mrb[0].mxu0
    %521 = vdwg.mxu0
    %v523 = vrot.slane %v517, 1
    %v526 = vadd.f32 %v476, %v517
    %v527 = vadd.f32 %v477, %v523
    %v528 = vxor.u32 %v526, 2147483648
    %v529 = vxor.u32 %v527, 2147483648
    %v530 = vmul.f32 %v528, 1.442695
    %v531 = vpow.pop %v530
    %v532 = vmul.f32 %v529, 1.442695
    %v533 = vpow.pop %v532
    %v534 = vadd.f32 %v531, 1.0
    %v535 = vadd.f32 %v533, 1.0
    %v536 = vrcp.pop %v534
    %v537 = vmul.f32 1.0, %v536
    %v538 = vrcp.pop %v535
    %v539 = vmul.f32 1.0, %v538
    %v540 = vtanh.pop %v526
    %v541 = vtanh.pop %v527
    %v543 = vrot.slane %v475, 1
    %544 = vrot.lane.b32.xlu0 %v475, 32
    %v545 = vpop.permute.xlu0 %544
    %546 = vrot.lane.b32.xlu0 %v543, 32
    %v547 = vpop.permute.xlu0 %546
    %v550 = vmul.f32 %v537, %v545
    %v551 = vmul.f32 %v539, %v547
    %554 = vrot.lane.b32.xlu0 %v540, 64
    %v555 = vpop.permute.xlu0 %554
    %556 = vrot.lane.b32.xlu0 %v541, 64
    %v557 = vpop.permute.xlu0 %556
    %v560 = vmul.f32 %v537, %v555
    %v561 = vmul.f32 %v539, %v557
    %564 = vrot.lane.b32.xlu0 %v560, 32
    %v565 = vpop.permute.xlu0 %564
    %566 = vrot.lane.b32.xlu0 %v561, 32
    %v567 = vpop.permute.xlu0 %566
    %v570 = vadd.f32 %v550, %v565
    %v571 = vadd.f32 %v551, %v567
    %v572 = vtanh.pop %v570
    %v573 = vtanh.pop %v571
    %576 = vrot.lane.b32.xlu0 %v572, 64
    %v577 = vpop.permute.xlu0 %576
    %578 = vrot.lane.b32.xlu0 %v573, 64
    %v579 = vpop.permute.xlu0 %578
    %v582 = vmul.f32 %v537, %v577
    %v583 = vmul.f32 %v539, %v579
    %v586 = vrot.slane %v583, 7
    %v587 = vsel %vm316, %v586, %v582
    %588 = vrot.lane.b32.xlu0 %v587, 32
    %v589 = vpop.permute.xlu0 %588
    %591 = vst.msk [vmem:[#allocation10] sm:$0x3] %vm321, %v589
    %v594 = vrot.slane %v571, 7
    %v595 = vsel %vm316, %v594, %v570
    %596 = vrot.lane.b32.xlu0 %v595, 96
    %v597 = vpop.permute.xlu0 %596
    %599 = vst.msk [vmem:[#allocation12] sm:$0x3] %vm321, %v597
    %600 = vrot.lane.b32.xlu0 %v582, 32
    %v601 = vpop.permute.xlu0 %600
    %602 = vrot.lane.b32.xlu0 %v583, 32
    %v603 = vpop.permute.xlu0 %602
    %606 = vst.msk [vmem:[#allocation9 + $0x2] sm:$0x1] %vm337, %v601
    %607 = vst.msk [vmem:[#allocation9 + $0xa] sm:$0x1] %vm337, %v603
    %v608 = vld [vmem:[#allocation10] sm:$0x3]
    %v609 = vld [vmem:[#allocation12] sm:$0x3]
    %v610 = vld [vmem:[#allocation2 + $0x3] sm:$0x1]
    %v611 = vld [vmem:[#allocation2 + $0xb] sm:$0x1]
    %v612 = vpack.c.bf16 %v608, %v608
    %v614 = vsel %vm95, %v612, 0
    %616 = vmatprep.subr.bf16.mxu0 0
    %617 = vmatpush1.bf16.msra.mxu0 %v204
    %618 = vmatprep.subr.bf16.mxu0 0
    %619 = vmatpush1.bf16.msra.mxu0 %v205
    %620 = vmatprep.subr.bf16.mxu0 0
    %621 = vmatpush1.bf16.msra.mxu0 0
    %622 = vmatprep.subr.bf16.mxu0 0
    %623 = vmatpush1.bf16.msra.mxu0 0
    %624 = vmatprep.subr.bf16.mxu0 0
    %625 = vmatpush1.bf16.msra.mxu0 0
    %626 = vmatprep.subr.bf16.mxu0 0
    %627 = vmatpush1.bf16.msra.mxu0 0
    %628 = vmatprep.subr.bf16.mxu0 0
    %629 = vmatpush1.bf16.msra.mxu0 0
    %630 = vmatprep.subr.bf16.mxu0 0
    %631 = vmatpush1.bf16.msra.mxu0 0
    %632 = vmatprep.subr.bf16.mxu0 0
    %633 = vmatpush1.bf16.msra.mxu0 0
    %634 = vmatprep.subr.bf16.mxu0 0
    %635 = vmatpush1.bf16.msra.mxu0 0
    %636 = vmatprep.subr.bf16.mxu0 0
    %637 = vmatpush1.bf16.msra.mxu0 0
    %638 = vmatprep.subr.bf16.mxu0 0
    %639 = vmatpush1.bf16.msra.mxu0 0
    %640 = vmatprep.subr.bf16.mxu0 0
    %641 = vmatpush1.bf16.msra.mxu0 0
    %642 = vmatprep.subr.bf16.mxu0 0
    %643 = vmatpush1.bf16.msra.mxu0 0
    %644 = vmatprep.subr.bf16.mxu0 0
    %645 = vmatpush1.bf16.msra.mxu0 0
    %646 = vmatprep.subr.bf16.mxu0 0
    %647 = vmatpush1.bf16.msra.mxu0 0
    %648 = vmatprep.mubr.bf16.mxu0 0
    %649 = vmatmul.mubr.bf16.gmra.mrb[0].mxu0 %v614
    %v650 = vpop.f32.mrb[0].mxu0
    %v651 = vadd.f32 0.0, %v650
    %v652 = vpop.f32.mrb[0].mxu0
    %v653 = vpop.f32.mrb[0].mxu0
    %v654 = vpop.f32.mrb[0].mxu0
    %655 = vdwg.mxu0
    %v657 = vrot.slane %v651, 1
    %v660 = vadd.f32 %v610, %v651
    %v661 = vadd.f32 %v611, %v657
    %v662 = vxor.u32 %v660, 2147483648
    %v663 = vxor.u32 %v661, 2147483648
    %v664 = vmul.f32 %v662, 1.442695
    %v665 = vpow.pop %v664
    %v666 = vmul.f32 %v663, 1.442695
    %v667 = vpow.pop %v666
    %v668 = vadd.f32 %v665, 1.0
    %v669 = vadd.f32 %v667, 1.0
    %v670 = vrcp.pop %v668
    %v671 = vmul.f32 1.0, %v670
    %v672 = vrcp.pop %v669
    %v673 = vmul.f32 1.0, %v672
    %v674 = vtanh.pop %v660
    %v675 = vtanh.pop %v661
    %v677 = vrot.slane %v609, 1
    %678 = vrot.lane.b32.xlu0 %v609, 32
    %v679 = vpop.permute.xlu0 %678
    %680 = vrot.lane.b32.xlu0 %v677, 32
    %v681 = vpop.permute.xlu0 %680
    %v684 = vmul.f32 %v671, %v679
    %v685 = vmul.f32 %v673, %v681
    %688 = vrot.lane.b32.xlu0 %v674, 64
    %v689 = vpop.permute.xlu0 %688
    %690 = vrot.lane.b32.xlu0 %v675, 64
    %v691 = vpop.permute.xlu0 %690
    %v694 = vmul.f32 %v671, %v689
    %v695 = vmul.f32 %v673, %v691
    %698 = vrot.lane.b32.xlu0 %v694, 32
    %v699 = vpop.permute.xlu0 %698
    %700 = vrot.lane.b32.xlu0 %v695, 32
    %v701 = vpop.permute.xlu0 %700
    %v704 = vadd.f32 %v684, %v699
    %v705 = vadd.f32 %v685, %v701
    %v706 = vtanh.pop %v704
    %v707 = vtanh.pop %v705
    %710 = vrot.lane.b32.xlu0 %v706, 64
    %v711 = vpop.permute.xlu0 %710
    %712 = vrot.lane.b32.xlu0 %v707, 64
    %v713 = vpop.permute.xlu0 %712
    %v716 = vmul.f32 %v671, %v711
    %v717 = vmul.f32 %v673, %v713
    %v720 = vrot.slane %v717, 7
    %v721 = vsel %vm316, %v720, %v716
    %722 = vrot.lane.b32.xlu0 %v721, 32
    %v723 = vpop.permute.xlu0 %722
    %725 = vst.msk [vmem:[#allocation10] sm:$0x3] %vm321, %v723
    %v728 = vrot.slane %v705, 7
    %v729 = vsel %vm316, %v728, %v704
    %730 = vrot.lane.b32.xlu0 %v729, 96
    %v731 = vpop.permute.xlu0 %730
    %733 = vst.msk [vmem:[#allocation12] sm:$0x3] %vm321, %v731
    %734 = vrot.lane.b32.xlu0 %v716, 32
    %v735 = vpop.permute.xlu0 %734
    %736 = vrot.lane.b32.xlu0 %v717, 32
    %v737 = vpop.permute.xlu0 %736
    %740 = vst.msk [vmem:[#allocation9 + $0x3] sm:$0x1] %vm337, %v735
    %741 = vst.msk [vmem:[#allocation9 + $0xb] sm:$0x1] %vm337, %v737
    %v742 = vld [vmem:[#allocation10] sm:$0x3]
    %v743 = vld [vmem:[#allocation12] sm:$0x3]
    %v744 = vld [vmem:[#allocation2 + $0x4] sm:$0x1]
    %v745 = vld [vmem:[#allocation2 + $0xc] sm:$0x1]
    %v746 = vpack.c.bf16 %v742, %v742
    %v748 = vsel %vm95, %v746, 0
    %750 = vmatprep.subr.bf16.mxu0 0
    %751 = vmatpush1.bf16.msra.mxu0 %v204
    %752 = vmatprep.subr.bf16.mxu0 0
    %753 = vmatpush1.bf16.msra.mxu0 %v205
    %754 = vmatprep.subr.bf16.mxu0 0
    %755 = vmatpush1.bf16.msra.mxu0 0
    %756 = vmatprep.subr.bf16.mxu0 0
    %757 = vmatpush1.bf16.msra.mxu0 0
    %758 = vmatprep.subr.bf16.mxu0 0
    %759 = vmatpush1.bf16.msra.mxu0 0
    %760 = vmatprep.subr.bf16.mxu0 0
    %761 = vmatpush1.bf16.msra.mxu0 0
    %762 = vmatprep.subr.bf16.mxu0 0
    %763 = vmatpush1.bf16.msra.mxu0 0
    %764 = vmatprep.subr.bf16.mxu0 0
    %765 = vmatpush1.bf16.msra.mxu0 0
    %766 = vmatprep.subr.bf16.mxu0 0
    %767 = vmatpush1.bf16.msra.mxu0 0
    %768 = vmatprep.subr.bf16.mxu0 0
    %769 = vmatpush1.bf16.msra.mxu0 0
    %770 = vmatprep.subr.bf16.mxu0 0
    %771 = vmatpush1.bf16.msra.mxu0 0
    %772 = vmatprep.subr.bf16.mxu0 0
    %773 = vmatpush1.bf16.msra.mxu0 0
    %774 = vmatprep.subr.bf16.mxu0 0
    %775 = vmatpush1.bf16.msra.mxu0 0
    %776 = vmatprep.subr.bf16.mxu0 0
    %777 = vmatpush1.bf16.msra.mxu0 0
    %778 = vmatprep.subr.bf16.mxu0 0
    %779 = vmatpush1.bf16.msra.mxu0 0
    %780 = vmatprep.subr.bf16.mxu0 0
    %781 = vmatpush1.bf16.msra.mxu0 0
    %782 = vmatprep.mubr.bf16.mxu0 0
    %783 = vmatmul.mubr.bf16.gmra.mrb[0].mxu0 %v748
    %v784 = vpop.f32.mrb[0].mxu0
    %v785 = vadd.f32 0.0, %v784
    %v786 = vpop.f32.mrb[0].mxu0
    %v787 = vpop.f32.mrb[0].mxu0
    %v788 = vpop.f32.mrb[0].mxu0
    %789 = vdwg.mxu0
    %v791 = vrot.slane %v785, 1
    %v794 = vadd.f32 %v744, %v785
    %v795 = vadd.f32 %v745, %v791
    %v796 = vxor.u32 %v794, 2147483648
    %v797 = vxor.u32 %v795, 2147483648
    %v798 = vmul.f32 %v796, 1.442695
    %v799 = vpow.pop %v798
    %v800 = vmul.f32 %v797, 1.442695
    %v801 = vpow.pop %v800
    %v802 = vadd.f32 %v799, 1.0
    %v803 = vadd.f32 %v801, 1.0
    %v804 = vrcp.pop %v802
    %v805 = vmul.f32 1.0, %v804
    %v806 = vrcp.pop %v803
    %v807 = vmul.f32 1.0, %v806
    %v808 = vtanh.pop %v794
    %v809 = vtanh.pop %v795
    %v811 = vrot.slane %v743, 1
    %812 = vrot.lane.b32.xlu0 %v743, 32
    %v813 = vpop.permute.xlu0 %812
    %814 = vrot.lane.b32.xlu0 %v811, 32
    %v815 = vpop.permute.xlu0 %814
    %v818 = vmul.f32 %v805, %v813
    %v819 = vmul.f32 %v807, %v815
    %822 = vrot.lane.b32.xlu0 %v808, 64
    %v823 = vpop.permute.xlu0 %822
    %824 = vrot.lane.b32.xlu0 %v809, 64
    %v825 = vpop.permute.xlu0 %824
    %v828 = vmul.f32 %v805, %v823
    %v829 = vmul.f32 %v807, %v825
    %832 = vrot.lane.b32.xlu0 %v828, 32
    %v833 = vpop.permute.xlu0 %832
    %834 = vrot.lane.b32.xlu0 %v829, 32
    %v835 = vpop.permute.xlu0 %834
    %v838 = vadd.f32 %v818, %v833
    %v839 = vadd.f32 %v819, %v835
    %v840 = vtanh.pop %v838
    %v841 = vtanh.pop %v839
    %844 = vrot.lane.b32.xlu0 %v840, 64
    %v845 = vpop.permute.xlu0 %844
    %846 = vrot.lane.b32.xlu0 %v841, 64
    %v847 = vpop.permute.xlu0 %846
    %v850 = vmul.f32 %v805, %v845
    %v851 = vmul.f32 %v807, %v847
    %v854 = vrot.slane %v851, 7
    %v855 = vsel %vm316, %v854, %v850
    %856 = vrot.lane.b32.xlu0 %v855, 32
    %v857 = vpop.permute.xlu0 %856
    %859 = vst.msk [vmem:[#allocation10] sm:$0x3] %vm321, %v857
    %v862 = vrot.slane %v839, 7
    %v863 = vsel %vm316, %v862, %v838
    %864 = vrot.lane.b32.xlu0 %v863, 96
    %v865 = vpop.permute.xlu0 %864
    %867 = vst.msk [vmem:[#allocation12] sm:$0x3] %vm321, %v865
    %868 = vrot.lane.b32.xlu0 %v850, 32
    %v869 = vpop.permute.xlu0 %868
    %870 = vrot.lane.b32.xlu0 %v851, 32
    %v871 = vpop.permute.xlu0 %870
    %874 = vst.msk [vmem:[#allocation9 + $0x4] sm:$0x1] %vm337, %v869
    %875 = vst.msk [vmem:[#allocation9 + $0xc] sm:$0x1] %vm337, %v871
    %v876 = vld [vmem:[#allocation10] sm:$0x3]
    %v877 = vld [vmem:[#allocation12] sm:$0x3]
    %v878 = vld [vmem:[#allocation2 + $0x5] sm:$0x1]
    %v879 = vld [vmem:[#allocation2 + $0xd] sm:$0x1]
    %v880 = vpack.c.bf16 %v876, %v876
    %v882 = vsel %vm95, %v880, 0
    %884 = vmatprep.subr.bf16.mxu0 0
    %885 = vmatpush1.bf16.msra.mxu0 %v204
    %886 = vmatprep.subr.bf16.mxu0 0
    %887 = vmatpush1.bf16.msra.mxu0 %v205
    %888 = vmatprep.subr.bf16.mxu0 0
    %889 = vmatpush1.bf16.msra.mxu0 0
    %890 = vmatprep.subr.bf16.mxu0 0
    %891 = vmatpush1.bf16.msra.mxu0 0
    %892 = vmatprep.subr.bf16.mxu0 0
    %893 = vmatpush1.bf16.msra.mxu0 0
    %894 = vmatprep.subr.bf16.mxu0 0
    %895 = vmatpush1.bf16.msra.mxu0 0
    %896 = vmatprep.subr.bf16.mxu0 0
    %897 = vmatpush1.bf16.msra.mxu0 0
    %898 = vmatprep.subr.bf16.mxu0 0
    %899 = vmatpush1.bf16.msra.mxu0 0
    %900 = vmatprep.subr.bf16.mxu0 0
    %901 = vmatpush1.bf16.msra.mxu0 0
    %902 = vmatprep.subr.bf16.mxu0 0
    %903 = vmatpush1.bf16.msra.mxu0 0
    %904 = vmatprep.subr.bf16.mxu0 0
    %905 = vmatpush1.bf16.msra.mxu0 0
    %906 = vmatprep.subr.bf16.mxu0 0
    %907 = vmatpush1.bf16.msra.mxu0 0
    %908 = vmatprep.subr.bf16.mxu0 0
    %909 = vmatpush1.bf16.msra.mxu0 0
    %910 = vmatprep.subr.bf16.mxu0 0
    %911 = vmatpush1.bf16.msra.mxu0 0
    %912 = vmatprep.subr.bf16.mxu0 0
    %913 = vmatpush1.bf16.msra.mxu0 0
    %914 = vmatprep.subr.bf16.mxu0 0
    %915 = vmatpush1.bf16.msra.mxu0 0
    %916 = vmatprep.mubr.bf16.mxu0 0
    %917 = vmatmul.mubr.bf16.gmra.mrb[0].mxu0 %v882
    %v918 = vpop.f32.mrb[0].mxu0
    %v919 = vadd.f32 0.0, %v918
    %v920 = vpop.f32.mrb[0].mxu0
    %v921 = vpop.f32.mrb[0].mxu0
    %v922 = vpop.f32.mrb[0].mxu0
    %923 = vdwg.mxu0
    %v925 = vrot.slane %v919, 1
    %v928 = vadd.f32 %v878, %v919
    %v929 = vadd.f32 %v879, %v925
    %v930 = vxor.u32 %v928, 2147483648
    %v931 = vxor.u32 %v929, 2147483648
    %v932 = vmul.f32 %v930, 1.442695
    %v933 = vpow.pop %v932
    %v934 = vmul.f32 %v931, 1.442695
    %v935 = vpow.pop %v934
    %v936 = vadd.f32 %v933, 1.0
    %v937 = vadd.f32 %v935, 1.0
    %v938 = vrcp.pop %v936
    %v939 = vmul.f32 1.0, %v938
    %v940 = vrcp.pop %v937
    %v941 = vmul.f32 1.0, %v940
    %v942 = vtanh.pop %v928
    %v943 = vtanh.pop %v929
    %v945 = vrot.slane %v877, 1
    %946 = vrot.lane.b32.xlu0 %v877, 32
    %v947 = vpop.permute.xlu0 %946
    %948 = vrot.lane.b32.xlu0 %v945, 32
    %v949 = vpop.permute.xlu0 %948
    %v952 = vmul.f32 %v939, %v947
    %v953 = vmul.f32 %v941, %v949
    %956 = vrot.lane.b32.xlu0 %v942, 64
    %v957 = vpop.permute.xlu0 %956
    %958 = vrot.lane.b32.xlu0 %v943, 64
    %v959 = vpop.permute.xlu0 %958
    %v962 = vmul.f32 %v939, %v957
    %v963 = vmul.f32 %v941, %v959
    %966 = vrot.lane.b32.xlu0 %v962, 32
    %v967 = vpop.permute.xlu0 %966
    %968 = vrot.lane.b32.xlu0 %v963, 32
    %v969 = vpop.permute.xlu0 %968
    %v972 = vadd.f32 %v952, %v967
    %v973 = vadd.f32 %v953, %v969
    %v974 = vtanh.pop %v972
    %v975 = vtanh.pop %v973
    %978 = vrot.lane.b32.xlu0 %v974, 64
    %v979 = vpop.permute.xlu0 %978
    %980 = vrot.lane.b32.xlu0 %v975, 64
    %v981 = vpop.permute.xlu0 %980
    %v984 = vmul.f32 %v939, %v979
    %v985 = vmul.f32 %v941, %v981
    %v988 = vrot.slane %v985, 7
    %v989 = vsel %vm316, %v988, %v984
    %990 = vrot.lane.b32.xlu0 %v989, 32
    %v991 = vpop.permute.xlu0 %990
    %993 = vst.msk [vmem:[#allocation10] sm:$0x3] %vm321, %v991
    %v996 = vrot.slane %v973, 7
    %v997 = vsel %vm316, %v996, %v972
    %998 = vrot.lane.b32.xlu0 %v997, 96
    %v999 = vpop.permute.xlu0 %998
    %1001 = vst.msk [vmem:[#allocation12] sm:$0x3] %vm321, %v999
    %1002 = vrot.lane.b32.xlu0 %v984, 32
    %v1003 = vpop.permute.xlu0 %1002
    %1004 = vrot.lane.b32.xlu0 %v985, 32
    %v1005 = vpop.permute.xlu0 %1004
    %1008 = vst.msk [vmem:[#allocation9 + $0x5] sm:$0x1] %vm337, %v1003
    %1009 = vst.msk [vmem:[#allocation9 + $0xd] sm:$0x1] %vm337, %v1005
    %v1010 = vld [vmem:[#allocation10] sm:$0x3]
    %v1011 = vld [vmem:[#allocation12] sm:$0x3]
    %v1012 = vld [vmem:[#allocation2 + $0x6] sm:$0x1]
    %v1013 = vld [vmem:[#allocation2 + $0xe] sm:$0x1]
    %v1014 = vpack.c.bf16 %v1010, %v1010
    %v1016 = vsel %vm95, %v1014, 0
    %1018 = vmatprep.subr.bf16.mxu0 0
    %1019 = vmatpush1.bf16.msra.mxu0 %v204
    %1020 = vmatprep.subr.bf16.mxu0 0
    %1021 = vmatpush1.bf16.msra.mxu0 %v205
    %1022 = vmatprep.subr.bf16.mxu0 0
    %1023 = vmatpush1.bf16.msra.mxu0 0
    %1024 = vmatprep.subr.bf16.mxu0 0
    %1025 = vmatpush1.bf16.msra.mxu0 0
    %1026 = vmatprep.subr.bf16.mxu0 0
    %1027 = vmatpush1.bf16.msra.mxu0 0
    %1028 = vmatprep.subr.bf16.mxu0 0
    %1029 = vmatpush1.bf16.msra.mxu0 0
    %1030 = vmatprep.subr.bf16.mxu0 0
    %1031 = vmatpush1.bf16.msra.mxu0 0
    %1032 = vmatprep.subr.bf16.mxu0 0
    %1033 = vmatpush1.bf16.msra.mxu0 0
    %1034 = vmatprep.subr.bf16.mxu0 0
    %1035 = vmatpush1.bf16.msra.mxu0 0
    %1036 = vmatprep.subr.bf16.mxu0 0
    %1037 = vmatpush1.bf16.msra.mxu0 0
    %1038 = vmatprep.subr.bf16.mxu0 0
    %1039 = vmatpush1.bf16.msra.mxu0 0
    %1040 = vmatprep.subr.bf16.mxu0 0
    %1041 = vmatpush1.bf16.msra.mxu0 0
    %1042 = vmatprep.subr.bf16.mxu0 0
    %1043 = vmatpush1.bf16.msra.mxu0 0
    %1044 = vmatprep.subr.bf16.mxu0 0
    %1045 = vmatpush1.bf16.msra.mxu0 0
    %1046 = vmatprep.subr.bf16.mxu0 0
    %1047 = vmatpush1.bf16.msra.mxu0 0
    %1048 = vmatprep.subr.bf16.mxu0 0
    %1049 = vmatpush1.bf16.msra.mxu0 0
    %1050 = vmatprep.mubr.bf16.mxu0 0
    %1051 = vmatmul.mubr.bf16.gmra.mrb[0].mxu0 %v1016
    %v1052 = vpop.f32.mrb[0].mxu0
    %v1053 = vadd.f32 0.0, %v1052
    %v1054 = vpop.f32.mrb[0].mxu0
    %v1055 = vpop.f32.mrb[0].mxu0
    %v1056 = vpop.f32.mrb[0].mxu0
    %1057 = vdwg.mxu0
    %v1059 = vrot.slane %v1053, 1
    %v1062 = vadd.f32 %v1012, %v1053
    %v1063 = vadd.f32 %v1013, %v1059
    %v1064 = vxor.u32 %v1062, 2147483648
    %v1065 = vxor.u32 %v1063, 2147483648
    %v1066 = vmul.f32 %v1064, 1.442695
    %v1067 = vpow.pop %v1066
    %v1068 = vmul.f32 %v1065, 1.442695
    %v1069 = vpow.pop %v1068
    %v1070 = vadd.f32 %v1067, 1.0
    %v1071 = vadd.f32 %v1069, 1.0
    %v1072 = vrcp.pop %v1070
    %v1073 = vmul.f32 1.0, %v1072
    %v1074 = vrcp.pop %v1071
    %v1075 = vmul.f32 1.0, %v1074
    %v1076 = vtanh.pop %v1062
    %v1077 = vtanh.pop %v1063
    %v1079 = vrot.slane %v1011, 1
    %1080 = vrot.lane.b32.xlu0 %v1011, 32
    %v1081 = vpop.permute.xlu0 %1080
    %1082 = vrot.lane.b32.xlu0 %v1079, 32
    %v1083 = vpop.permute.xlu0 %1082
    %v1086 = vmul.f32 %v1073, %v1081
    %v1087 = vmul.f32 %v1075, %v1083
    %1090 = vrot.lane.b32.xlu0 %v1076, 64
    %v1091 = vpop.permute.xlu0 %1090
    %1092 = vrot.lane.b32.xlu0 %v1077, 64
    %v1093 = vpop.permute.xlu0 %1092
    %v1096 = vmul.f32 %v1073, %v1091
    %v1097 = vmul.f32 %v1075, %v1093
    %1100 = vrot.lane.b32.xlu0 %v1096, 32
    %v1101 = vpop.permute.xlu0 %1100
    %1102 = vrot.lane.b32.xlu0 %v1097, 32
    %v1103 = vpop.permute.xlu0 %1102
    %v1106 = vadd.f32 %v1086, %v1101
    %v1107 = vadd.f32 %v1087, %v1103
    %v1108 = vtanh.pop %v1106
    %v1109 = vtanh.pop %v1107
    %1112 = vrot.lane.b32.xlu0 %v1108, 64
    %v1113 = vpop.permute.xlu0 %1112
    %1114 = vrot.lane.b32.xlu0 %v1109, 64
    %v1115 = vpop.permute.xlu0 %1114
    %v1118 = vmul.f32 %v1073, %v1113
    %v1119 = vmul.f32 %v1075, %v1115
    %v1122 = vrot.slane %v1119, 7
    %v1123 = vsel %vm316, %v1122, %v1118
    %1124 = vrot.lane.b32.xlu0 %v1123, 32
    %v1125 = vpop.permute.xlu0 %1124
    %1127 = vst.msk [vmem:[#allocation10] sm:$0x3] %vm321, %v1125
    %v1130 = vrot.slane %v1107, 7
    %v1131 = vsel %vm316, %v1130, %v1106
    %1132 = vrot.lane.b32.xlu0 %v1131, 96
    %v1133 = vpop.permute.xlu0 %1132
    %1135 = vst.msk [vmem:[#allocation12] sm:$0x3] %vm321, %v1133
    %1136 = vrot.lane.b32.xlu0 %v1118, 32
    %v1137 = vpop.permute.xlu0 %1136
    %1138 = vrot.lane.b32.xlu0 %v1119, 32
    %v1139 = vpop.permute.xlu0 %1138
    %1142 = vst.msk [vmem:[#allocation9 + $0x6] sm:$0x1] %vm337, %v1137
    %1143 = vst.msk [vmem:[#allocation9 + $0xe] sm:$0x1] %vm337, %v1139
    %v1144 = vld [vmem:[#allocation10] sm:$0x3]
    %v1145 = vld [vmem:[#allocation12] sm:$0x3]
    %v1146 = vld [vmem:[#allocation2 + $0x7] sm:$0x1]
    %v1147 = vld [vmem:[#allocation2 + $0xf] sm:$0x1]
    %v1148 = vpack.c.bf16 %v1144, %v1144
    %v1150 = vsel %vm95, %v1148, 0
    %1152 = vmatprep.subr.bf16.mxu0 0
    %1153 = vmatpush1.bf16.msra.mxu0 %v204
    %1154 = vmatprep.subr.bf16.mxu0 0
    %1155 = vmatpush1.bf16.msra.mxu0 %v205
    %1156 = vmatprep.subr.bf16.mxu0 0
    %1157 = vmatpush1.bf16.msra.mxu0 0
    %1158 = vmatprep.subr.bf16.mxu0 0
    %1159 = vmatpush1.bf16.msra.mxu0 0
    %1160 = vmatprep.subr.bf16.mxu0 0
    %1161 = vmatpush1.bf16.msra.mxu0 0
    %1162 = vmatprep.subr.bf16.mxu0 0
    %1163 = vmatpush1.bf16.msra.mxu0 0
    %1164 = vmatprep.subr.bf16.mxu0 0
    %1165 = vmatpush1.bf16.msra.mxu0 0
    %1166 = vmatprep.subr.bf16.mxu0 0
    %1167 = vmatpush1.bf16.msra.mxu0 0
    %1168 = vmatprep.subr.bf16.mxu0 0
    %1169 = vmatpush1.bf16.msra.mxu0 0
    %1170 = vmatprep.subr.bf16.mxu0 0
    %1171 = vmatpush1.bf16.msra.mxu0 0
    %1172 = vmatprep.subr.bf16.mxu0 0
    %1173 = vmatpush1.bf16.msra.mxu0 0
    %1174 = vmatprep.subr.bf16.mxu0 0
    %1175 = vmatpush1.bf16.msra.mxu0 0
    %1176 = vmatprep.subr.bf16.mxu0 0
    %1177 = vmatpush1.bf16.msra.mxu0 0
    %1178 = vmatprep.subr.bf16.mxu0 0
    %1179 = vmatpush1.bf16.msra.mxu0 0
    %1180 = vmatprep.subr.bf16.mxu0 0
    %1181 = vmatpush1.bf16.msra.mxu0 0
    %1182 = vmatprep.subr.bf16.mxu0 0
    %1183 = vmatpush1.bf16.msra.mxu0 0
    %1184 = vmatprep.mubr.bf16.mxu0 0
    %1185 = vmatmul.mubr.bf16.gmra.mrb[0].mxu0 %v1150
    %v1186 = vpop.f32.mrb[0].mxu0
    %v1187 = vadd.f32 0.0, %v1186
    %v1188 = vpop.f32.mrb[0].mxu0
    %v1189 = vpop.f32.mrb[0].mxu0
    %v1190 = vpop.f32.mrb[0].mxu0
    %1191 = vdwg.mxu0
    %v1193 = vrot.slane %v1187, 1
    %v1196 = vadd.f32 %v1146, %v1187
    %v1197 = vadd.f32 %v1147, %v1193
    %v1198 = vxor.u32 %v1196, 2147483648
    %v1199 = vxor.u32 %v1197, 2147483648
    %v1200 = vmul.f32 %v1198, 1.442695
    %v1201 = vpow.pop %v1200
    %v1202 = vmul.f32 %v1199, 1.442695
    %v1203 = vpow.pop %v1202
    %v1204 = vadd.f32 %v1201, 1.0
    %v1205 = vadd.f32 %v1203, 1.0
    %v1206 = vrcp.pop %v1204
    %v1207 = vmul.f32 1.0, %v1206
    %v1208 = vrcp.pop %v1205
    %v1209 = vmul.f32 1.0, %v1208
    %v1210 = vtanh.pop %v1196
    %v1211 = vtanh.pop %v1197
    %v1213 = vrot.slane %v1145, 1
    %1214 = vrot.lane.b32.xlu0 %v1145, 32
    %v1215 = vpop.permute.xlu0 %1214
    %1216 = vrot.lane.b32.xlu0 %v1213, 32
    %v1217 = vpop.permute.xlu0 %1216
    %v1220 = vmul.f32 %v1207, %v1215
    %v1221 = vmul.f32 %v1209, %v1217
    %1224 = vrot.lane.b32.xlu0 %v1210, 64
    %v1225 = vpop.permute.xlu0 %1224
    %1226 = vrot.lane.b32.xlu0 %v1211, 64
    %v1227 = vpop.permute.xlu0 %1226
    %v1230 = vmul.f32 %v1207, %v1225
    %v1231 = vmul.f32 %v1209, %v1227
    %1234 = vrot.lane.b32.xlu0 %v1230, 32
    %v1235 = vpop.permute.xlu0 %1234
    %1236 = vrot.lane.b32.xlu0 %v1231, 32
    %v1237 = vpop.permute.xlu0 %1236
    %v1240 = vadd.f32 %v1220, %v1235
    %v1241 = vadd.f32 %v1221, %v1237
    %v1242 = vtanh.pop %v1240
    %v1243 = vtanh.pop %v1241
    %1246 = vrot.lane.b32.xlu0 %v1242, 64
    %v1247 = vpop.permute.xlu0 %1246
    %1248 = vrot.lane.b32.xlu0 %v1243, 64
    %v1249 = vpop.permute.xlu0 %1248
    %v1252 = vmul.f32 %v1207, %v1247
    %v1253 = vmul.f32 %v1209, %v1249
    %v1256 = vrot.slane %v1253, 7
    %v1257 = vsel %vm316, %v1256, %v1252
    %1258 = vrot.lane.b32.xlu0 %v1257, 32
    %v1259 = vpop.permute.xlu0 %1258
    %1261 = vst.msk [vmem:[#allocation10] sm:$0x3] %vm321, %v1259
    %v1264 = vrot.slane %v1241, 7
    %v1265 = vsel %vm316, %v1264, %v1240
    %1266 = vrot.lane.b32.xlu0 %v1265, 96
    %v1267 = vpop.permute.xlu0 %1266
    %1269 = vst.msk [vmem:[#allocation12] sm:$0x3] %vm321, %v1267
    %1270 = vrot.lane.b32.xlu0 %v1252, 32
    %v1271 = vpop.permute.xlu0 %1270
    %1272 = vrot.lane.b32.xlu0 %v1253, 32
    %v1273 = vpop.permute.xlu0 %1272
    %1276 = vst.msk [vmem:[#allocation9 + $0x7] sm:$0x1] %vm337, %v1271
    %1277 = vst.msk [vmem:[#allocation9 + $0xf] sm:$0x1] %vm337, %v1273
    // Predicated region
    $region34: #{tpu_custom_call.1} parent=1 // pred_check
      _
    $region35: #{tpu_custom_call.1} parent=1 // pred_check_branch
      %1279 = sbr.rel (0) target = $region37
    $region36: #{tpu_custom_call.1} parent=1 // pred_region
      %s1281 = ssub.s32 256, 256
      %1282 = vsyncadd [#allocation5], %s1281
      %s1283 = sshll.u32 [#allocation9], 4
      %s1284 = int_to_ptr.vmem [resolvable:$true] %s1283
      %1289 = dma.vmem_to_hbm [thread:$0]  %s1284, 256, %s4, [#allocation5], 128, 128, 8
    $region37: #{tpu_custom_call.1} parent=1 // pred_fallthru
      _
    // Predicated region
    $region38: #{tpu_custom_call.1} parent=1 // pred_check
      _
    $region39: #{tpu_custom_call.1} parent=1 // pred_check_branch
      %1291 = sbr.rel (0) target = $region41
    $region40: #{tpu_custom_call.1} parent=1 // pred_region
      %s1293 = ssub.s32 32, 32
      %1294 = vsyncadd [#allocation11], %s1293
      %s1296 = sshll.u32 [#allocation10], 4
      %s1297 = int_to_ptr.vmem [resolvable:$true] %s1296
      %1299 = dma.vmem_to_hbm [thread:$0]  %s1297, 32, %s5, [#allocation11]
    $region41: #{tpu_custom_call.1} parent=1 // pred_fallthru
      _
    // Predicated region
    $region42: #{tpu_custom_call.1} parent=1 // pred_check
      _
    $region43: #{tpu_custom_call.1} parent=1 // pred_check_branch
      %1301 = sbr.rel (0) target = $region45
    $region44: #{tpu_custom_call.1} parent=1 // pred_region
      %s1303 = ssub.s32 32, 32
      %1304 = vsyncadd [#allocation11], %s1303
      %s1306 = sshll.u32 [#allocation12], 4
      %s1307 = int_to_ptr.vmem [resolvable:$true] %s1306
      %1309 = dma.vmem_to_hbm [thread:$0]  %s1307, 32, %s6, [#allocation11]
    $region45: #{tpu_custom_call.1} parent=1 // pred_fallthru
      _
    // Predicated region
    $region46: #{tpu_custom_call.1} parent=1 // pred_check
      _
    $region47: #{tpu_custom_call.1} parent=1 // pred_check_branch
      %1311 = sbr.rel (0) target = $region49
    $region48: #{tpu_custom_call.1} parent=1 // pred_region
      %1312 = dma.done [#allocation5], 256
    $region49: #{tpu_custom_call.1} parent=1 // pred_fallthru
      _
    // Predicated region
    $region50: #{tpu_custom_call.1} parent=1 // pred_check
      _
    $region51: #{tpu_custom_call.1} parent=1 // pred_check_branch
      %1314 = sbr.rel (0) target = $region53
    $region52: #{tpu_custom_call.1} parent=1 // pred_region
      %1315 = dma.done [#allocation11], 32
    $region53: #{tpu_custom_call.1} parent=1 // pred_fallthru
      _
    // Predicated region
    $region54: #{tpu_custom_call.1} parent=1 // pred_check
      _
    $region55: #{tpu_custom_call.1} parent=1 // pred_check_branch
      %1317 = sbr.rel (0) target = $region57
    $region56: #{tpu_custom_call.1} parent=1 // pred_region
      %1318 = dma.done [#allocation11], 32
    $region57: #{tpu_custom_call.1} parent=1 // pred_fallthru
      _
    %1319 = vsyncpa [#allocation4], 1
    %1320 = vsyncpa [#allocation7], 1
    %1321 = vsyncpa [#allocation5], 1
    %1322 = vsyncpa [#allocation11], 1

</llo_original>
